<compile_context>
chip_gen: v6e
topology: v6e:2x2x1
jax: 0.10.0
libtpu: 0.0.40
codegen_flags: <defaults>
</compile_context>

<pallas_src>
import jax
import jax.numpy as jnp
from jax import lax
from jax.experimental import pallas as pl
from jax.experimental.pallas import tpu as pltpu

# ---------------- sizes (lane-aligned) ----------------
ATOM_FDIM       = 128   # raw atom feature dim (padded to lane width)
HIDDEN          = 128   # args.hidden_size
FFN_HIDDEN      = 128   # args.ffn_hidden_size
OUTPUT_SIZE     = 1     # args.output_size (classification -> 1 logit)
OUT_PAD         = 128   # lane-dense output slab width
DEPTH           = 3     # message passing depth

N_GROUPS        = 2     # grid: molecule groups (parallel across cores)
MOLS_PER_GROUP  = 8
ATOMS_PER_MOL   = 16
ATOMS_PER_GROUP = MOLS_PER_GROUP * ATOMS_PER_MOL   # 128
BATCH           = N_GROUPS * MOLS_PER_GROUP        # 16 molecules
N_ATOMS         = N_GROUPS * ATOMS_PER_GROUP       # 256 atoms

# ---------------- packed weight-slab row offsets ----------------
_R_WI  = 0
_R_WH  = _R_WI + ATOM_FDIM                 # 128
_R_WO  = _R_WH + HIDDEN                    # 256   (W_o acts on [f, a_msg] -> 256 rows)
_R_W1  = _R_WO + ATOM_FDIM + HIDDEN        # 512
_R_W2  = _R_W1 + HIDDEN                    # 640
W_ROWS = _R_W2 + FFN_HIDDEN                # 768
B_ROWS = 8                                 # rows 0/1/2 = b_o / b1 / b2 (padded to 8)


def molecule_model_kernel(f_ref, adj_ref, pool_ref, w_ref, b_ref, out_ref):
    f    = f_ref[...]        # [ATOMS_PER_GROUP, ATOM_FDIM]
    adj  = adj_ref[...]      # [ATOMS_PER_GROUP, ATOMS_PER_GROUP]  (diagonal block)
    pool = pool_ref[...]     # [MOLS_PER_GROUP,  ATOMS_PER_GROUP]

    # static slices of the VMEM-resident weight slab (zero-cost views)
    wi = w_ref[_R_WI:_R_WI + ATOM_FDIM, :]               # [128, H]
    wh = w_ref[_R_WH:_R_WH + HIDDEN, :]                  # [H, H]
    wo = w_ref[_R_WO:_R_WO + ATOM_FDIM + HIDDEN, :]      # [256, H]  fused W_o
    w1 = w_ref[_R_W1:_R_W1 + HIDDEN, :]                  # [H, FFN]
    w2 = w_ref[_R_W2:_R_W2 + FFN_HIDDEN, :]              # [FFN, OUT_PAD] (cols>=1 zero)

    b  = b_ref[...]                                      # [8, 128]
    bo = b[0:1, :]
    b1 = b[1:2, :]
    b2 = b[2:3, :]

    # ---------------- encoder: message passing ----------------
    inp = jnp.dot(f, wi, preferred_element_type=jnp.float32)        # [A, H]
    h0  = jax.nn.relu(inp)

    def mp_step(_, h):
        nei = jnp.dot(adj, h, preferred_element_type=jnp.float32)    # neighbor sum
        msg = jnp.dot(nei, wh, preferred_element_type=jnp.float32)
        return jax.nn.relu(inp + msg)

    h = lax.fori_loop(0, DEPTH - 1, mp_step, h0, unroll=True)

    a_msg = jnp.dot(adj, h, preferred_element_type=jnp.float32)      # [A, H]

    # fused output projection: ReLU([f, a_msg] @ W_o + b_o)
    cat = jnp.concatenate([f, a_msg], axis=-1)                       # [A, 256]
    atom_hid = jax.nn.relu(
        jnp.dot(cat, wo, preferred_element_type=jnp.float32) + bo
    )                                                                # [A, H]

    # per-molecule mean pooling
    mol_vecs = jnp.dot(pool, atom_hid, preferred_element_type=jnp.float32)  # [M, H]

    # ---------------- ffn (dropout = identity at inference) ----------------
    h1 = jax.nn.relu(
        jnp.dot(mol_vecs, w1, preferred_element_type=jnp.float32) + b1
    )                                                                # [M, FFN]
    out = jnp.dot(h1, w2, preferred_element_type=jnp.float32) + b2   # [M, OUT_PAD]

    # classification + eval -> sigmoid, lane-dense store
    out_ref[...] = jax.nn.sigmoid(out)


def molecule_model_forward(f_atoms, adj, pool, w_slab, b_slab):
    out_padded = pl.pallas_call(
        molecule_model_kernel,
        out_shape=jax.ShapeDtypeStruct((BATCH, OUT_PAD), jnp.float32),
        grid_spec=pltpu.PrefetchScalarGridSpec(
            num_scalar_prefetch=0,
            grid=(N_GROUPS,),
            in_specs=[
                # per-group atom features (streamed)
                pl.BlockSpec((ATOMS_PER_GROUP, ATOM_FDIM), lambda g: (g, 0)),
                # block-diagonal adjacency: only the (g, g) block is touched
                pl.BlockSpec((ATOMS_PER_GROUP, ATOMS_PER_GROUP), lambda g: (g, g)),
                # per-group mean-pool block
                pl.BlockSpec((MOLS_PER_GROUP, ATOMS_PER_GROUP), lambda g: (g, g)),
                # packed weight slab: same block every step -> VMEM-resident
                pl.BlockSpec((W_ROWS, HIDDEN), lambda g: (0, 0)),
                # packed bias slab: resident
                pl.BlockSpec((B_ROWS, OUT_PAD), lambda g: (0, 0)),
            ],
            out_specs=pl.BlockSpec((MOLS_PER_GROUP, OUT_PAD), lambda g: (g, 0)),
        ),
        compiler_params=pltpu.CompilerParams(
            dimension_semantics=("parallel",)),
    )(f_atoms, adj, pool, w_slab, b_slab)
    return out_padded[:, :OUTPUT_SIZE]


def _init_params(key):
    ks = jax.random.split(key, 8)
    s = 0.1
    wi = s * jax.random.normal(ks[0], (ATOM_FDIM, HIDDEN), jnp.float32)
    wh = s * jax.random.normal(ks[1], (HIDDEN, HIDDEN), jnp.float32)
    wo = s * jax.random.normal(ks[2], (ATOM_FDIM + HIDDEN, HIDDEN), jnp.float32)
    bo = s * jax.random.normal(ks[3], (1, HIDDEN), jnp.float32)
    w1 = s * jax.random.normal(ks[4], (HIDDEN, FFN_HIDDEN), jnp.float32)
    b1 = s * jax.random.normal(ks[5], (1, FFN_HIDDEN), jnp.float32)
    w2 = s * jax.random.normal(ks[6], (FFN_HIDDEN, OUTPUT_SIZE), jnp.float32)
    b2 = s * jax.random.normal(ks[7], (1, OUTPUT_SIZE), jnp.float32)
    return wi, wh, wo, bo, w1, b1, w2, b2


def _pack_params(wi, wh, wo, bo, w1, b1, w2, b2):
    # lane-pad W2 / b2 to OUT_PAD (only column 0 is real)
    w2_pad = jnp.zeros((FFN_HIDDEN, OUT_PAD), jnp.float32).at[:, :OUTPUT_SIZE].set(w2)
    w_slab = jnp.concatenate([wi, wh, wo, w1, w2_pad], axis=0)        # [768, 128]
    b_slab = jnp.zeros((B_ROWS, OUT_PAD), jnp.float32)
    b_slab = b_slab.at[0, :].set(bo[0])
    b_slab = b_slab.at[1, :].set(b1[0])
    b_slab = b_slab.at[2, :OUTPUT_SIZE].set(b2[0])
    return w_slab, b_slab


def _reference(f, adj, pool, wi, wh, wo, bo, w1, b1, w2, b2):
    inp = f @ wi
    h = jax.nn.relu(inp)
    for _ in range(DEPTH - 1):
        h = jax.nn.relu(inp + (adj @ h) @ wh)
    a_msg = adj @ h
    atom_hid = jax.nn.relu(jnp.concatenate([f, a_msg], axis=-1) @ wo + bo)
    mol_vecs = pool @ atom_hid
    h1 = jax.nn.relu(mol_vecs @ w1 + b1)
    return jax.nn.sigmoid(h1 @ w2 + b2)


if __name__ == "__main__":
    key = jax.random.PRNGKey(0)
    k_f, k_adj = jax.random.split(key, 2)

    # atom features
    f_atoms = jax.random.normal(k_f, (N_ATOMS, ATOM_FDIM), jnp.float32)

    # per-molecule symmetric 0/1 adjacency (no self loops), placed block-diagonally
    a = jax.random.uniform(k_adj, (BATCH, ATOMS_PER_MOL, ATOMS_PER_MOL)) < 0.3
    a = jnp.triu(a.astype(jnp.float32), k=1)
    a = a + jnp.swapaxes(a, -1, -2)
    adj = jnp.zeros((N_ATOMS, N_ATOMS), jnp.float32)
    for m in range(BATCH):
        lo = m * ATOMS_PER_MOL
        adj = adj.at[lo:lo + ATOMS_PER_MOL, lo:lo + ATOMS_PER_MOL].set(a[m])

    # mean-pooling matrix: molecule m owns atoms [m*16, (m+1)*16)
    mol_id = jnp.repeat(jnp.arange(BATCH), ATOMS_PER_MOL)               # [N_ATOMS]
    pool = (jnp.arange(BATCH)[:, None] == mol_id[None, :]).astype(jnp.float32)
    pool = pool / jnp.float32(ATOMS_PER_MOL)                            # rows sum to 1

    params = _init_params(jax.random.PRNGKey(1))
    w_slab, b_slab = _pack_params(*params)

    out = molecule_model_forward(f_atoms, adj, pool, w_slab, b_slab)
    out = jax.block_until_ready(out)

    # correctness checks against a pure-JAX reference
    with jax.default_matmul_precision("highest"):
        ref = _reference(f_atoms, adj, pool, *params)
    assert out.shape == (BATCH, OUTPUT_SIZE)
    assert bool(jnp.all((out >= 0.0) & (out <= 1.0)))                   # sigmoid range
    assert bool(jnp.allclose(out, ref, atol=2e-2, rtol=2e-2))
    print("KERNEL_OK")
</pallas_src>

<mosaic_0001>
module attributes {stable_mosaic.version = 11 : i64} {
  func.func @molecule_model_kernel(%arg0: i32, %arg1: memref<128x128xf32, #tpu.memory_space<vmem>>, %arg2: memref<128x128xf32, #tpu.memory_space<vmem>>, %arg3: memref<8x128xf32, #tpu.memory_space<vmem>>, %arg4: memref<768x128xf32, #tpu.memory_space<vmem>>, %arg5: memref<8x128xf32, #tpu.memory_space<vmem>>, %arg6: memref<8x128xf32, #tpu.memory_space<vmem>>) attributes {dimension_semantics = [#tpu.dimension_semantics<parallel>], iteration_bounds = array<i64: 2>, scalar_prefetch = 0 : i64, scratch_operands = 0 : i64, tpu.core_type = #tpu.core_type<tc>, window_params = [{transform_indices = @transform_0, window_bounds = array<i64: 128, 128>}, {transform_indices = @transform_1, window_bounds = array<i64: 128, 128>}, {transform_indices = @transform_2, window_bounds = array<i64: 8, 128>}, {pipeline_mode = #tpu.pipeline_mode<synchronous>, transform_indices = @transform_3, window_bounds = array<i64: 768, 128>}, {pipeline_mode = #tpu.pipeline_mode<synchronous>, transform_indices = @transform_4, window_bounds = array<i64: 8, 128>}, {transform_indices = @transform_5, window_bounds = array<i64: 8, 128>}]} {
    %c0 = arith.constant 0 : index
    %c0_0 = arith.constant 0 : index
    %0 = vector.load %arg1[%c0, %c0_0] : memref<128x128xf32, #tpu.memory_space<vmem>>, vector<128x128xf32>
    %c0_1 = arith.constant 0 : index
    %c0_2 = arith.constant 0 : index
    %1 = vector.load %arg2[%c0_1, %c0_2] : memref<128x128xf32, #tpu.memory_space<vmem>>, vector<128x128xf32>
    %c0_3 = arith.constant 0 : index
    %c0_4 = arith.constant 0 : index
    %2 = vector.load %arg3[%c0_3, %c0_4] : memref<8x128xf32, #tpu.memory_space<vmem>>, vector<8x128xf32>
    %c0_5 = arith.constant 0 : index
    %c0_6 = arith.constant 0 : index
    %3 = vector.load %arg4[%c0_5, %c0_6] : memref<768x128xf32, #tpu.memory_space<vmem>>, vector<128x128xf32>
    %c128 = arith.constant 128 : index
    %c0_7 = arith.constant 0 : index
    %4 = vector.load %arg4[%c128, %c0_7] : memref<768x128xf32, #tpu.memory_space<vmem>>, vector<128x128xf32>
    %c256 = arith.constant 256 : index
    %c0_8 = arith.constant 0 : index
    %5 = vector.load %arg4[%c256, %c0_8] : memref<768x128xf32, #tpu.memory_space<vmem>>, vector<256x128xf32>
    %c512 = arith.constant 512 : index
    %c0_9 = arith.constant 0 : index
    %6 = vector.load %arg4[%c512, %c0_9] : memref<768x128xf32, #tpu.memory_space<vmem>>, vector<128x128xf32>
    %c640 = arith.constant 640 : index
    %c0_10 = arith.constant 0 : index
    %7 = vector.load %arg4[%c640, %c0_10] : memref<768x128xf32, #tpu.memory_space<vmem>>, vector<128x128xf32>
    %c0_11 = arith.constant 0 : index
    %c0_12 = arith.constant 0 : index
    %8 = vector.load %arg5[%c0_11, %c0_12] : memref<8x128xf32, #tpu.memory_space<vmem>>, vector<8x128xf32>
    %9 = vector.extract_strided_slice %8 {offsets = [0, 0], sizes = [1, 128], strides = [1, 1]} : vector<8x128xf32> to vector<1x128xf32>
    %10 = vector.extract_strided_slice %8 {offsets = [1, 0], sizes = [1, 128], strides = [1, 1]} : vector<8x128xf32> to vector<1x128xf32>
    %11 = vector.extract_strided_slice %8 {offsets = [2, 0], sizes = [1, 128], strides = [1, 1]} : vector<8x128xf32> to vector<1x128xf32>
    %cst = arith.constant dense<0.000000e+00> : vector<128x128xf32>
    %12 = tpu.matmul %0, %3, %cst {dimension_numbers = #tpu.dot_dimension_numbers<[1], [0], [0], [1], [0, 0, 1, 1], [], []>} : vector<128x128xf32>, vector<128x128xf32>, vector<128x128xf32> -> vector<128x128xf32>
    %cst_13 = arith.constant 0.000000e+00 : f32
    %13 = vector.broadcast %cst_13 : f32 to vector<128x128xf32>
    %14 = arith.maximumf %12, %13 : vector<128x128xf32>
    %c0_i32 = arith.constant 0 : i32
    %cst_14 = arith.constant dense<0.000000e+00> : vector<128x128xf32>
    %15 = tpu.matmul %1, %14, %cst_14 {dimension_numbers = #tpu.dot_dimension_numbers<[1], [0], [0], [1], [0, 0, 1, 1], [], []>} : vector<128x128xf32>, vector<128x128xf32>, vector<128x128xf32> -> vector<128x128xf32>
    %cst_15 = arith.constant dense<0.000000e+00> : vector<128x128xf32>
    %16 = tpu.matmul %15, %4, %cst_15 {dimension_numbers = #tpu.dot_dimension_numbers<[1], [0], [0], [1], [0, 0, 1, 1], [], []>} : vector<128x128xf32>, vector<128x128xf32>, vector<128x128xf32> -> vector<128x128xf32>
    %17 = arith.addf %12, %16 : vector<128x128xf32>
    %cst_16 = arith.constant 0.000000e+00 : f32
    %18 = vector.broadcast %cst_16 : f32 to vector<128x128xf32>
    %19 = arith.maximumf %17, %18 : vector<128x128xf32>
    %c1_i32 = arith.constant 1 : i32
    %cst_17 = arith.constant dense<0.000000e+00> : vector<128x128xf32>
    %20 = tpu.matmul %1, %19, %cst_17 {dimension_numbers = #tpu.dot_dimension_numbers<[1], [0], [0], [1], [0, 0, 1, 1], [], []>} : vector<128x128xf32>, vector<128x128xf32>, vector<128x128xf32> -> vector<128x128xf32>
    %cst_18 = arith.constant dense<0.000000e+00> : vector<128x128xf32>
    %21 = tpu.matmul %20, %4, %cst_18 {dimension_numbers = #tpu.dot_dimension_numbers<[1], [0], [0], [1], [0, 0, 1, 1], [], []>} : vector<128x128xf32>, vector<128x128xf32>, vector<128x128xf32> -> vector<128x128xf32>
    %22 = arith.addf %12, %21 : vector<128x128xf32>
    %cst_19 = arith.constant 0.000000e+00 : f32
    %23 = vector.broadcast %cst_19 : f32 to vector<128x128xf32>
    %24 = arith.maximumf %22, %23 : vector<128x128xf32>
    %cst_20 = arith.constant dense<0.000000e+00> : vector<128x128xf32>
    %25 = tpu.matmul %1, %24, %cst_20 {dimension_numbers = #tpu.dot_dimension_numbers<[1], [0], [0], [1], [0, 0, 1, 1], [], []>} : vector<128x128xf32>, vector<128x128xf32>, vector<128x128xf32> -> vector<128x128xf32>
    %26 = tpu.concatenate %0, %25 in 1 : vector<128x128xf32>, vector<128x128xf32> -> vector<128x256xf32>
    %cst_21 = arith.constant dense<0.000000e+00> : vector<128x128xf32>
    %27 = tpu.matmul %26, %5, %cst_21 {dimension_numbers = #tpu.dot_dimension_numbers<[1], [0], [0], [1], [0, 0, 1, 1], [], []>} : vector<128x256xf32>, vector<256x128xf32>, vector<128x128xf32> -> vector<128x128xf32>
    %28 = vector.broadcast %9 : vector<1x128xf32> to vector<128x128xf32>
    %29 = arith.addf %27, %28 : vector<128x128xf32>
    %cst_22 = arith.constant 0.000000e+00 : f32
    %30 = vector.broadcast %cst_22 : f32 to vector<128x128xf32>
    %31 = arith.maximumf %29, %30 : vector<128x128xf32>
    %cst_23 = arith.constant dense<0.000000e+00> : vector<8x128xf32>
    %32 = tpu.matmul %2, %31, %cst_23 {dimension_numbers = #tpu.dot_dimension_numbers<[1], [0], [0], [1], [0, 0, 1, 1], [], []>} : vector<8x128xf32>, vector<128x128xf32>, vector<8x128xf32> -> vector<8x128xf32>
    %cst_24 = arith.constant dense<0.000000e+00> : vector<8x128xf32>
    %33 = tpu.matmul %32, %6, %cst_24 {dimension_numbers = #tpu.dot_dimension_numbers<[1], [0], [0], [1], [0, 0, 1, 1], [], []>} : vector<8x128xf32>, vector<128x128xf32>, vector<8x128xf32> -> vector<8x128xf32>
    %34 = vector.broadcast %10 : vector<1x128xf32> to vector<8x128xf32>
    %35 = arith.addf %33, %34 : vector<8x128xf32>
    %cst_25 = arith.constant 0.000000e+00 : f32
    %36 = vector.broadcast %cst_25 : f32 to vector<8x128xf32>
    %37 = arith.maximumf %35, %36 : vector<8x128xf32>
    %cst_26 = arith.constant dense<0.000000e+00> : vector<8x128xf32>
    %38 = tpu.matmul %37, %7, %cst_26 {dimension_numbers = #tpu.dot_dimension_numbers<[1], [0], [0], [1], [0, 0, 1, 1], [], []>} : vector<8x128xf32>, vector<128x128xf32>, vector<8x128xf32> -> vector<8x128xf32>
    %39 = vector.broadcast %11 : vector<1x128xf32> to vector<8x128xf32>
    %40 = arith.addf %38, %39 : vector<8x128xf32>
    %41 = arith.negf %40 : vector<8x128xf32>
    %42 = math.exp %41 : vector<8x128xf32>
    %cst_27 = arith.constant 1.000000e+00 : f32
    %43 = vector.broadcast %cst_27 : f32 to vector<8x128xf32>
    %44 = arith.addf %43, %42 : vector<8x128xf32>
    %45 = arith.divf %43, %44 : vector<8x128xf32>
    %c0_28 = arith.constant 0 : index
    %c0_29 = arith.constant 0 : index
    %46 = vector.load %arg6[%c0_28, %c0_29] : memref<8x128xf32, #tpu.memory_space<vmem>>, vector<8x128xf32>
    tpu.vector_store %arg6[%c0_28, %c0_29], %45 {strides = array<i32>} : memref<8x128xf32, #tpu.memory_space<vmem>>, vector<8x128xf32>,
    return
  }
  func.func @transform_0(%arg0: i32) -> (i32, i32) {
    %c0_i32 = arith.constant 0 : i32
    %c0_i32_0 = arith.constant 0 : i32
    return %arg0, %c0_i32 : i32, i32
  }
  func.func @transform_1(%arg0: i32) -> (i32, i32) {
    %c0_i32 = arith.constant 0 : i32
    return %arg0, %arg0 : i32, i32
  }
  func.func @transform_2(%arg0: i32) -> (i32, i32) {
    %c0_i32 = arith.constant 0 : i32
    return %arg0, %arg0 : i32, i32
  }
  func.func @transform_3(%arg0: i32) -> (i32, i32) {
    %c0_i32 = arith.constant 0 : i32
    %c0_i32_0 = arith.constant 0 : i32
    %c0_i32_1 = arith.constant 0 : i32
    return %c0_i32, %c0_i32_0 : i32, i32
  }
  func.func @transform_4(%arg0: i32) -> (i32, i32) {
    %c0_i32 = arith.constant 0 : i32
    %c0_i32_0 = arith.constant 0 : i32
    %c0_i32_1 = arith.constant 0 : i32
    return %c0_i32, %c0_i32_0 : i32, i32
  }
  func.func @transform_5(%arg0: i32) -> (i32, i32) {
    %c0_i32 = arith.constant 0 : i32
    %c0_i32_0 = arith.constant 0 : i32
    return %arg0, %c0_i32 : i32, i32
  }
}

</mosaic_0001>

<llo_original>
// kernel: tpu_custom_call.1
$region0: #{tpu_custom_call.1}
  #allocation0 [shape = 'u32[]', space=smem, size = 0x4, offset = 0x4, fixed_abs, tag = 'smem constant byte address 0x4 - core index']
  #allocation1 [shape = 'u32[144,128]{1,0:T(1,128)}', space=vmem, size = 0x12000, scoped, tag = 'internal scratch']
  %s0 = inlined_call_operand.hbm [shape: f32[256,128], index: 0, kind: input, shape index: {}]
  %s1 = inlined_call_operand.hbm [shape: f32[256,256], index: 1, kind: input, shape index: {}]
  %s2 = inlined_call_operand.hbm [shape: f32[16,256], index: 2, kind: input, shape index: {}]
  %s3 = inlined_call_operand.hbm [shape: f32[768,128], index: 3, kind: input, shape index: {}]
  %s4 = inlined_call_operand.hbm [shape: f32[8,128], index: 4, kind: input, shape index: {}]
  %s5 = inlined_call_operand.hbm [shape: f32[16,128], index: 5, kind: output, shape index: {}]
  %s6 = sld [smem:[#allocation0]]
  $region73: #{tpu_custom_call.1} parent=0
    _
  %s8 = ssub.s32 1, %s6
  %s9 = scalar_select 0, %s8, %s6
  $region1: #{tpu_custom_call.1} parent=0
    #allocation2 [shape = 'u8[131072]{0}', space=vmem, size = 0x20000, scoped, tag = 'input window, operand 0']
    #allocation3 [shape = 's32[2]{0}', space=sflag, size = 0x8, scoped, tag = 'scoped memory for tpu_custom_call.1']
    #allocation4 [shape = 's32[2]{0}', space=sflag, size = 0x8, scoped, tag = 'scoped memory for tpu_custom_call.1']
    #allocation5 [shape = 'u8[131072]{0}', space=vmem, size = 0x20000, scoped, tag = 'input window, operand 1']
    #allocation6 [shape = 's32[2]{0}', space=sflag, size = 0x8, scoped, tag = 'scoped memory for tpu_custom_call.1']
    #allocation7 [shape = 'u8[8192]{0}', space=vmem, size = 0x2000, scoped, tag = 'input window, operand 2']
    #allocation8 [shape = 'u8[393216]{0}', space=vmem, size = 0x60000, scoped, tag = 'input window, operand 3, single buffered']
    #allocation9 [shape = 's32[1]{0}', space=sflag, size = 0x4, scoped, tag = 'scoped memory for tpu_custom_call.1']
    #allocation10 [shape = 'u8[4096]{0}', space=vmem, size = 0x1000, scoped, tag = 'input window, operand 4, single buffered']
    #allocation11 [shape = 'u8[8192]{0}', space=vmem, size = 0x2000, scoped, tag = 'output window, operand 0']
    %10 = vsyncpa [#allocation3], 0
    %s11 = scalar_lea.sflag [#allocation3], 1
    %12 = vsyncpa %s11, 0
    %13 = vsyncpa [#allocation6], 0
    %s14 = scalar_lea.sflag [#allocation6], 1
    %15 = vsyncpa %s14, 0
    %16 = vsyncpa [#allocation9], 0
    %17 = vsyncpa [#allocation4], 0
    %s18 = scalar_lea.sflag [#allocation4], 1
    %19 = vsyncpa %s18, 0
    loop: start=0, step=1, limit=4
    $region2: #{tpu_custom_call.1} parent=1 // loop_pre_header
      _
    $region3: #{tpu_custom_call.1} parent=1 // loop_header
      %s21 = sphi 0, %s25
      %p22 = scmp.ge.s32.totalorder %s21, 4
      %s31 = sphi 0, %s33
      %s34 = sphi 0, %s31
      %s35 = sphi 0, %s34
      %s51 = sphi 0, %s35
      %s59 = sphi 0, %s61
      %s62 = sphi 0, %s59
      %s63 = sphi 0, %s62
      %s79 = sphi 0, %s63
      %s87 = sphi 0, %s89
      %s90 = sphi 0, %s87
      %s91 = sphi 0, %s90
      %s107 = sphi 0, %s91
      %s111 = sphi 0, %s111
      %s113 = sphi 0, %s111
      %s114 = sphi 0, %s113
      %s128 = sphi 0, %s114
      %s132 = sphi 0, %s132
      %s134 = sphi 0, %s132
      %s135 = sphi 0, %s134
      %s149 = sphi 0, %s135
      %s155 = sphi 0, %s157
      %s158 = sphi 0, %s155
      %s159 = sphi 0, %s158
      %s175 = sphi 0, %s159
    $region4: #{tpu_custom_call.1} parent=1 // loop_header_branch
      %24 = sbr.rel (%p22) target = $region8
    $region5: #{tpu_custom_call.1} parent=1 // loop_body
      %s26 = ssub.s32 %s21, 1
      %s27 = ssub.s32 %s21, 2
      %s28 = sadd.s32 %s21, 1
      %s29 = ssub.s32 %s21, %s28
      %p30 = scmp.eq.s32.totalorder %s29, 0
      %s32 = sadd.s32 %s31, 1
      %s33 = scalar_select %p30, %s31, %s32
      %p36 = pneg %p30
      %p37 = scmp.eq.s32.totalorder %s21, 1
      %p38 = por %p36, %p37
      %p39 = scmp.ne.s32.totalorder %s31, %s34
      %p40 = scmp.eq.s32.totalorder %s21, 0
      %p41 = por %p39, %p40
      %p42 = scmp.ne.s32.totalorder %s31, %s34
      %p43 = scmp.eq.s32.totalorder %s26, 1
      %p44 = por %p42, %p43
      %p45 = scmp.ne.s32.totalorder %s34, %s35
      %p46 = scmp.eq.s32.totalorder %s26, 0
      %p47 = por %p45, %p46
      %p48 = scmp.ne.s32.totalorder %s34, %s35
      %p49 = scmp.eq.s32.totalorder %s27, 1
      %p50 = por %p48, %p49
      %p52 = scmp.ne.s32.totalorder %s35, %s51
      %p53 = scmp.eq.s32.totalorder %s27, 0
      %p54 = por %p52, %p53
      %s55 = ssub.s32 %s21, %s28
      %s56 = ssub.s32 %s21, %s28
      %s57 = sor.u32 %s55, %s56
      %p58 = scmp.eq.s32.totalorder %s57, 0
      %s60 = sadd.s32 %s59, 1
      %s61 = scalar_select %p58, %s59, %s60
      %p64 = pneg %p58
      %p65 = scmp.eq.s32.totalorder %s21, 1
      %p66 = por %p64, %p65
      %p67 = scmp.ne.s32.totalorder %s59, %s62
      %p68 = scmp.eq.s32.totalorder %s21, 0
      %p69 = por %p67, %p68
      %p70 = scmp.ne.s32.totalorder %s59, %s62
      %p71 = scmp.eq.s32.totalorder %s26, 1
      %p72 = por %p70, %p71
      %p73 = scmp.ne.s32.totalorder %s62, %s63
      %p74 = scmp.eq.s32.totalorder %s26, 0
      %p75 = por %p73, %p74
      %p76 = scmp.ne.s32.totalorder %s62, %s63
      %p77 = scmp.eq.s32.totalorder %s27, 1
      %p78 = por %p76, %p77
      %p80 = scmp.ne.s32.totalorder %s63, %s79
      %p81 = scmp.eq.s32.totalorder %s27, 0
      %p82 = por %p80, %p81
      %s83 = ssub.s32 %s21, %s28
      %s84 = ssub.s32 %s21, %s28
      %s85 = sor.u32 %s83, %s84
      %p86 = scmp.eq.s32.totalorder %s85, 0
      %s88 = sadd.s32 %s87, 1
      %s89 = scalar_select %p86, %s87, %s88
      %p92 = pneg %p86
      %p93 = scmp.eq.s32.totalorder %s21, 1
      %p94 = por %p92, %p93
      %p95 = scmp.ne.s32.totalorder %s87, %s90
      %p96 = scmp.eq.s32.totalorder %s21, 0
      %p97 = por %p95, %p96
      %p98 = scmp.ne.s32.totalorder %s87, %s90
      %p99 = scmp.eq.s32.totalorder %s26, 1
      %p100 = por %p98, %p99
      %p101 = scmp.ne.s32.totalorder %s90, %s91
      %p102 = scmp.eq.s32.totalorder %s26, 0
      %p103 = por %p101, %p102
      %p104 = scmp.ne.s32.totalorder %s90, %s91
      %p105 = scmp.eq.s32.totalorder %s27, 1
      %p106 = por %p104, %p105
      %p108 = scmp.ne.s32.totalorder %s91, %s107
      %p109 = scmp.eq.s32.totalorder %s27, 0
      %p110 = por %p108, %p109
      %s112 = sadd.s32 %s111, 1
      %p115 = scmp.eq.s32.totalorder %s21, 1
      %p116 = scmp.ne.s32.totalorder %s111, %s113
      %p117 = scmp.eq.s32.totalorder %s21, 0
      %p118 = por %p116, %p117
      %p119 = scmp.ne.s32.totalorder %s111, %s113
      %p120 = scmp.eq.s32.totalorder %s26, 1
      %p121 = por %p119, %p120
      %p122 = scmp.ne.s32.totalorder %s113, %s114
      %p123 = scmp.eq.s32.totalorder %s26, 0
      %p124 = por %p122, %p123
      %p125 = scmp.ne.s32.totalorder %s113, %s114
      %p126 = scmp.eq.s32.totalorder %s27, 1
      %p127 = por %p125, %p126
      %p129 = scmp.ne.s32.totalorder %s114, %s128
      %p130 = scmp.eq.s32.totalorder %s27, 0
      %p131 = por %p129, %p130
      %s133 = sadd.s32 %s132, 1
      %p136 = scmp.eq.s32.totalorder %s21, 1
      %p137 = scmp.ne.s32.totalorder %s132, %s134
      %p138 = scmp.eq.s32.totalorder %s21, 0
      %p139 = por %p137, %p138
      %p140 = scmp.ne.s32.totalorder %s132, %s134
      %p141 = scmp.eq.s32.totalorder %s26, 1
      %p142 = por %p140, %p141
      %p143 = scmp.ne.s32.totalorder %s134, %s135
      %p144 = scmp.eq.s32.totalorder %s26, 0
      %p145 = por %p143, %p144
      %p146 = scmp.ne.s32.totalorder %s134, %s135
      %p147 = scmp.eq.s32.totalorder %s27, 1
      %p148 = por %p146, %p147
      %p150 = scmp.ne.s32.totalorder %s135, %s149
      %p151 = scmp.eq.s32.totalorder %s27, 0
      %p152 = por %p150, %p151
      %s153 = ssub.s32 %s21, %s28
      %p154 = scmp.eq.s32.totalorder %s153, 0
      %s156 = sadd.s32 %s155, 1
      %s157 = scalar_select %p154, %s155, %s156
      %p160 = pneg %p154
      %p161 = scmp.eq.s32.totalorder %s21, 1
      %p162 = por %p160, %p161
      %p163 = scmp.ne.s32.totalorder %s155, %s158
      %p164 = scmp.eq.s32.totalorder %s21, 0
      %p165 = por %p163, %p164
      %p166 = scmp.ne.s32.totalorder %s155, %s158
      %p167 = scmp.eq.s32.totalorder %s26, 1
      %p168 = por %p166, %p167
      %p169 = scmp.ne.s32.totalorder %s158, %s159
      %p170 = scmp.eq.s32.totalorder %s26, 0
      %p171 = por %p169, %p170
      %p172 = scmp.ne.s32.totalorder %s158, %s159
      %p173 = scmp.eq.s32.totalorder %s27, 1
      %p174 = por %p172, %p173
      %p176 = scmp.ne.s32.totalorder %s159, %s175
      %p177 = scmp.eq.s32.totalorder %s27, 0
      %p178 = por %p176, %p177
      %p179 = scmp.le.s32.totalorder 1, %s21
      %p180 = scmp.lt.s32.totalorder %s21, 3
      %p181 = pnand %p179, %p180
      %p182 = pneg %p181
      // Predicated region
      $region9: #{tpu_custom_call.1} parent=5 // pred_check
        _
      $region10: #{tpu_custom_call.1} parent=5 // pred_check_branch
        %184 = sbr.rel (%p181) target = $region12
      $region11: #{tpu_custom_call.1} parent=5 // pred_region
        %s185 = ssub.s32 %s21, 1
        // Predicated region
        $region13: #{tpu_custom_call.1} parent=11 // pred_check
          %p186 = pneg %p124
        $region14: #{tpu_custom_call.1} parent=11 // pred_check_branch
          %188 = sbr.rel (%p186) target = $region16
        $region15: #{tpu_custom_call.1} parent=11 // pred_region
          %s190 = ssub.s32 12288, 12288
          %191 = vsyncadd [#allocation9], %s190
          %s192 = sshll.u32 [#allocation8], 4
          %s193 = int_to_ptr.vmem [resolvable:$true] %s192
          %198 = dma.hbm_to_vmem [thread:$0]  %s3, 12288, %s193, [#allocation9], 128, 128, 8
        $region16: #{tpu_custom_call.1} parent=11 // pred_fallthru
          _
        // Predicated region
        $region17: #{tpu_custom_call.1} parent=11 // pred_check
          %p199 = pneg %p145
        $region18: #{tpu_custom_call.1} parent=11 // pred_check_branch
          %201 = sbr.rel (%p199) target = $region20
        $region19: #{tpu_custom_call.1} parent=11 // pred_region
          %s203 = ssub.s32 128, 128
          %204 = vsyncadd [#allocation9], %s203
          %s206 = sshll.u32 [#allocation10], 4
          %s207 = int_to_ptr.vmem [resolvable:$true] %s206
          %209 = dma.hbm_to_vmem [thread:$0]  %s4, 128, %s207, [#allocation9]
        $region20: #{tpu_custom_call.1} parent=11 // pred_fallthru
          _
      $region12: #{tpu_custom_call.1} parent=5 // pred_fallthru
        _
      %p210 = scmp.lt.s32.totalorder %s21, 2
      // Predicated region
      $region21: #{tpu_custom_call.1} parent=5 // pred_check
        %p211 = pneg %p210
      $region22: #{tpu_custom_call.1} parent=5 // pred_check_branch
        %213 = sbr.rel (%p211) target = $region24
      $region23: #{tpu_custom_call.1} parent=5 // pred_region
        // Predicated region
        $region25: #{tpu_custom_call.1} parent=23 // pred_check
          %p214 = pneg %p41
        $region26: #{tpu_custom_call.1} parent=23 // pred_check_branch
          %216 = sbr.rel (%p214) target = $region28
        $region27: #{tpu_custom_call.1} parent=23 // pred_region
          %s217 = sand.u32 %s31, 1
          %s218 = scalar_lea.sflag [#allocation3], %s217
          %s219 = sand.u32 %s31, 1
          %s220 = smul.addr %s219, 128
          %s221 = scalar_lea.vmem [#allocation2], %s220
          %s222 = smul.u32 16, %s21
          %s224 = ssub.s32 2048, 2048
          %225 = vsyncadd %s218, %s224
          %s226 = smul.addr %s222, 128
          %s227 = scalar_lea.hbm %s0, %s226
          %s228 = sshll.u32 %s221, 4
          %s229 = int_to_ptr.vmem [resolvable:$true] %s228
          %234 = dma.hbm_to_vmem [thread:$0]  %s227, 2048, %s229, %s218, 128, 128, 8
        $region28: #{tpu_custom_call.1} parent=23 // pred_fallthru
          _
        // Predicated region
        $region29: #{tpu_custom_call.1} parent=23 // pred_check
          %p235 = pneg %p69
        $region30: #{tpu_custom_call.1} parent=23 // pred_check_branch
          %237 = sbr.rel (%p235) target = $region32
        $region31: #{tpu_custom_call.1} parent=23 // pred_region
          %s238 = sand.u32 %s21, 1
          %s239 = scalar_lea.sflag [#allocation6], %s238
          %s240 = sand.u32 %s59, 1
          %s241 = smul.addr %s240, 128
          %s242 = scalar_lea.vmem [#allocation5], %s241
          %s243 = smul.u32 16, %s21
          %s245 = ssub.s32 2048, 2048
          %246 = vsyncadd %s239, %s245
          %s247 = smul.addr %s243, 2
          %s248 = sadd.s32 %s21, %s247
          %s249 = smul.addr %s248, 128
          %s250 = scalar_lea.hbm %s1, %s249
          %s251 = sshll.u32 %s242, 4
          %s252 = int_to_ptr.vmem [resolvable:$true] %s251
          %257 = dma.hbm_to_vmem [thread:$0]  %s250, 2048, %s252, %s239, 256, 128, 8
        $region32: #{tpu_custom_call.1} parent=23 // pred_fallthru
          _
        // Predicated region
        $region33: #{tpu_custom_call.1} parent=23 // pred_check
          %p258 = pneg %p97
        $region34: #{tpu_custom_call.1} parent=23 // pred_check_branch
          %260 = sbr.rel (%p258) target = $region36
        $region35: #{tpu_custom_call.1} parent=23 // pred_region
          %s261 = sand.u32 %s21, 1
          %s262 = scalar_lea.sflag [#allocation6], %s261
          %s263 = sand.u32 %s87, 1
          %s264 = smul.addr %s263, 8
          %s265 = scalar_lea.vmem [#allocation7], %s264
          %s267 = ssub.s32 128, 128
          %268 = vsyncadd %s262, %s267
          %s269 = smul.addr %s21, 2
          %s270 = sadd.s32 %s21, %s269
          %s271 = smul.addr %s270, 128
          %s272 = scalar_lea.hbm %s2, %s271
          %s274 = sshll.u32 %s265, 4
          %s275 = int_to_ptr.vmem [resolvable:$true] %s274
          %277 = dma.hbm_to_vmem [thread:$0]  %s272, 128, %s275, %s262
        $region36: #{tpu_custom_call.1} parent=23 // pred_fallthru
          _
      $region24: #{tpu_custom_call.1} parent=5 // pred_fallthru
        _
      %p278 = scmp.le.s32.totalorder 1, %s21
      %p279 = scmp.lt.s32.totalorder %s21, 3
      %p280 = pnand %p278, %p279
      %p281 = pneg %p280
      // Predicated region
      $region37: #{tpu_custom_call.1} parent=5 // pred_check
        _
      $region38: #{tpu_custom_call.1} parent=5 // pred_check_branch
        %283 = sbr.rel (%p280) target = $region40
      $region39: #{tpu_custom_call.1} parent=5 // pred_region
        %s284 = ssub.s32 %s21, 1
        %s285 = sand.u32 %s34, 1
        %s286 = scalar_lea.sflag [#allocation3], %s285
        %s287 = sand.u32 %s34, 1
        %s288 = smul.addr %s287, 128
        %s289 = scalar_lea.vmem [#allocation2], %s288
        // Predicated region
        $region41: #{tpu_custom_call.1} parent=39 // pred_check
          %p290 = pneg %p47
        $region42: #{tpu_custom_call.1} parent=39 // pred_check_branch
          %292 = sbr.rel (%p290) target = $region44
        $region43: #{tpu_custom_call.1} parent=39 // pred_region
          %293 = dma.done %s286, 2048
        $region44: #{tpu_custom_call.1} parent=39 // pred_fallthru
          _
        %s294 = sand.u32 %s26, 1
        %s295 = scalar_lea.sflag [#allocation6], %s294
        %s296 = sand.u32 %s62, 1
        %s297 = smul.addr %s296, 128
        %s298 = scalar_lea.vmem [#allocation5], %s297
        // Predicated region
        $region45: #{tpu_custom_call.1} parent=39 // pred_check
          %p299 = pneg %p75
        $region46: #{tpu_custom_call.1} parent=39 // pred_check_branch
          %301 = sbr.rel (%p299) target = $region48
        $region47: #{tpu_custom_call.1} parent=39 // pred_region
          %302 = dma.done %s295, 2048
        $region48: #{tpu_custom_call.1} parent=39 // pred_fallthru
          _
        %s303 = sand.u32 %s26, 1
        %s304 = scalar_lea.sflag [#allocation6], %s303
        %s305 = sand.u32 %s90, 1
        %s306 = smul.addr %s305, 8
        %s307 = scalar_lea.vmem [#allocation7], %s306
        // Predicated region
        $region49: #{tpu_custom_call.1} parent=39 // pred_check
          %p308 = pneg %p103
        $region50: #{tpu_custom_call.1} parent=39 // pred_check_branch
          %310 = sbr.rel (%p308) target = $region52
        $region51: #{tpu_custom_call.1} parent=39 // pred_region
          %311 = dma.done %s304, 128
        $region52: #{tpu_custom_call.1} parent=39 // pred_fallthru
          _
        // Predicated region
        $region53: #{tpu_custom_call.1} parent=39 // pred_check
          %p312 = pneg %p124
        $region54: #{tpu_custom_call.1} parent=39 // pred_check_branch
          %314 = sbr.rel (%p312) target = $region56
        $region55: #{tpu_custom_call.1} parent=39 // pred_region
          %315 = dma.done [#allocation9], 12288
        $region56: #{tpu_custom_call.1} parent=39 // pred_fallthru
          _
        // Predicated region
        $region57: #{tpu_custom_call.1} parent=39 // pred_check
          %p316 = pneg %p145
        $region58: #{tpu_custom_call.1} parent=39 // pred_check_branch
          %318 = sbr.rel (%p316) target = $region60
        $region59: #{tpu_custom_call.1} parent=39 // pred_region
          %319 = dma.done [#allocation9], 128
        $region60: #{tpu_custom_call.1} parent=39 // pred_fallthru
          _
        %s320 = sand.u32 %s34, 1
        %s321 = scalar_lea.sflag [#allocation3], %s320
        %s322 = sand.u32 %s34, 1
        %s323 = smul.addr %s322, 128
        %s324 = scalar_lea.vmem [#allocation2], %s323
        %p325 = pneg %p47
        %p326 = pneg %p44
        %s327 = sand.u32 %s26, 1
        %s328 = scalar_lea.sflag [#allocation6], %s327
        %s329 = sand.u32 %s62, 1
        %s330 = smul.addr %s329, 128
        %s331 = scalar_lea.vmem [#allocation5], %s330
        %p332 = pneg %p75
        %p333 = pneg %p72
        %s334 = sand.u32 %s26, 1
        %s335 = scalar_lea.sflag [#allocation6], %s334
        %s336 = sand.u32 %s90, 1
        %s337 = smul.addr %s336, 8
        %s338 = scalar_lea.vmem [#allocation7], %s337
        %p339 = pneg %p103
        %p340 = pneg %p100
        %p341 = pneg %p124
        %p342 = pneg %p121
        %p343 = pneg %p145
        %p344 = pneg %p142
        %p345 = pneg %p171
        %p346 = pneg %p168
        %s347 = sand.u32 %s158, 1
        %s348 = scalar_lea.sflag [#allocation4], %s347
        %s349 = sand.u32 %s158, 1
        %s350 = smul.addr %s349, 8
        %s351 = scalar_lea.vmem [#allocation11], %s350
        %s352 = smul.u32 16, %s26
        %s353 = smul.u32 16, %s26
        %v354 = vld [vmem:[%s289] sm:$0xff]
        %v355 = vld [vmem:[%s289 + $0x8] sm:$0xff]
        %v356 = vld [vmem:[%s289 + $0x10] sm:$0xff]
        %v357 = vld [vmem:[%s289 + $0x18] sm:$0xff]
        %v358 = vld [vmem:[%s289 + $0x20] sm:$0xff]
        %v359 = vld [vmem:[%s289 + $0x28] sm:$0xff]
        %v360 = vld [vmem:[%s289 + $0x30] sm:$0xff]
        %v361 = vld [vmem:[%s289 + $0x38] sm:$0xff]
        %v362 = vld [vmem:[%s289 + $0x40] sm:$0xff]
        %v363 = vld [vmem:[%s289 + $0x48] sm:$0xff]
        %v364 = vld [vmem:[%s289 + $0x50] sm:$0xff]
        %v365 = vld [vmem:[%s289 + $0x58] sm:$0xff]
        %v366 = vld [vmem:[%s289 + $0x60] sm:$0xff]
        %v367 = vld [vmem:[%s289 + $0x68] sm:$0xff]
        %v368 = vld [vmem:[%s289 + $0x70] sm:$0xff]
        %v369 = vld [vmem:[%s289 + $0x78] sm:$0xff]
        %v370 = vld [vmem:[%s298] sm:$0xff]
        %v371 = vld [vmem:[%s298 + $0x8] sm:$0xff]
        %v372 = vld [vmem:[%s298 + $0x10] sm:$0xff]
        %v373 = vld [vmem:[%s298 + $0x18] sm:$0xff]
        %v374 = vld [vmem:[%s298 + $0x20] sm:$0xff]
        %v375 = vld [vmem:[%s298 + $0x28] sm:$0xff]
        %v376 = vld [vmem:[%s298 + $0x30] sm:$0xff]
        %v377 = vld [vmem:[%s298 + $0x38] sm:$0xff]
        %v378 = vld [vmem:[%s298 + $0x40] sm:$0xff]
        %v379 = vld [vmem:[%s298 + $0x48] sm:$0xff]
        %v380 = vld [vmem:[%s298 + $0x50] sm:$0xff]
        %v381 = vld [vmem:[%s298 + $0x58] sm:$0xff]
        %v382 = vld [vmem:[%s298 + $0x60] sm:$0xff]
        %v383 = vld [vmem:[%s298 + $0x68] sm:$0xff]
        %v384 = vld [vmem:[%s298 + $0x70] sm:$0xff]
        %v385 = vld [vmem:[%s298 + $0x78] sm:$0xff]
        %v386 = vld [vmem:[%s307] sm:$0xff]
        %v387 = vld [vmem:[#allocation8] sm:$0xff]
        %v388 = vld [vmem:[#allocation8 + $0x8] sm:$0xff]
        %v389 = vld [vmem:[#allocation8 + $0x10] sm:$0xff]
        %v390 = vld [vmem:[#allocation8 + $0x18] sm:$0xff]
        %v391 = vld [vmem:[#allocation8 + $0x20] sm:$0xff]
        %v392 = vld [vmem:[#allocation8 + $0x28] sm:$0xff]
        %v393 = vld [vmem:[#allocation8 + $0x30] sm:$0xff]
        %v394 = vld [vmem:[#allocation8 + $0x38] sm:$0xff]
        %v395 = vld [vmem:[#allocation8 + $0x40] sm:$0xff]
        %v396 = vld [vmem:[#allocation8 + $0x48] sm:$0xff]
        %v397 = vld [vmem:[#allocation8 + $0x50] sm:$0xff]
        %v398 = vld [vmem:[#allocation8 + $0x58] sm:$0xff]
        %v399 = vld [vmem:[#allocation8 + $0x60] sm:$0xff]
        %v400 = vld [vmem:[#allocation8 + $0x68] sm:$0xff]
        %v401 = vld [vmem:[#allocation8 + $0x70] sm:$0xff]
        %v402 = vld [vmem:[#allocation8 + $0x78] sm:$0xff]
        %v403 = vld [vmem:[#allocation8 + $0x80] sm:$0xff]
        %v404 = vld [vmem:[#allocation8 + $0x88] sm:$0xff]
        %v405 = vld [vmem:[#allocation8 + $0x90] sm:$0xff]
        %v406 = vld [vmem:[#allocation8 + $0x98] sm:$0xff]
        %v407 = vld [vmem:[#allocation8 + $0xa0] sm:$0xff]
        %v408 = vld [vmem:[#allocation8 + $0xa8] sm:$0xff]
        %v409 = vld [vmem:[#allocation8 + $0xb0] sm:$0xff]
        %v410 = vld [vmem:[#allocation8 + $0xb8] sm:$0xff]
        %v411 = vld [vmem:[#allocation8 + $0xc0] sm:$0xff]
        %v412 = vld [vmem:[#allocation8 + $0xc8] sm:$0xff]
        %v413 = vld [vmem:[#allocation8 + $0xd0] sm:$0xff]
        %v414 = vld [vmem:[#allocation8 + $0xd8] sm:$0xff]
        %v415 = vld [vmem:[#allocation8 + $0xe0] sm:$0xff]
        %v416 = vld [vmem:[#allocation8 + $0xe8] sm:$0xff]
        %v417 = vld [vmem:[#allocation8 + $0xf0] sm:$0xff]
        %v418 = vld [vmem:[#allocation8 + $0xf8] sm:$0xff]
        %v419 = vld [vmem:[#allocation8 + $0x100] sm:$0xff]
        %v420 = vld [vmem:[#allocation8 + $0x108] sm:$0xff]
        %v421 = vld [vmem:[#allocation8 + $0x110] sm:$0xff]
        %v422 = vld [vmem:[#allocation8 + $0x118] sm:$0xff]
        %v423 = vld [vmem:[#allocation8 + $0x120] sm:$0xff]
        %v424 = vld [vmem:[#allocation8 + $0x128] sm:$0xff]
        %v425 = vld [vmem:[#allocation8 + $0x130] sm:$0xff]
        %v426 = vld [vmem:[#allocation8 + $0x138] sm:$0xff]
        %v427 = vld [vmem:[#allocation8 + $0x140] sm:$0xff]
        %v428 = vld [vmem:[#allocation8 + $0x148] sm:$0xff]
        %v429 = vld [vmem:[#allocation8 + $0x150] sm:$0xff]
        %v430 = vld [vmem:[#allocation8 + $0x158] sm:$0xff]
        %v431 = vld [vmem:[#allocation8 + $0x160] sm:$0xff]
        %v432 = vld [vmem:[#allocation8 + $0x168] sm:$0xff]
        %v433 = vld [vmem:[#allocation8 + $0x170] sm:$0xff]
        %v434 = vld [vmem:[#allocation8 + $0x178] sm:$0xff]
        %v435 = vld [vmem:[#allocation8 + $0x180] sm:$0xff]
        %v436 = vld [vmem:[#allocation8 + $0x188] sm:$0xff]
        %v437 = vld [vmem:[#allocation8 + $0x190] sm:$0xff]
        %v438 = vld [vmem:[#allocation8 + $0x198] sm:$0xff]
        %v439 = vld [vmem:[#allocation8 + $0x1a0] sm:$0xff]
        %v440 = vld [vmem:[#allocation8 + $0x1a8] sm:$0xff]
        %v441 = vld [vmem:[#allocation8 + $0x1b0] sm:$0xff]
        %v442 = vld [vmem:[#allocation8 + $0x1b8] sm:$0xff]
        %v443 = vld [vmem:[#allocation8 + $0x1c0] sm:$0xff]
        %v444 = vld [vmem:[#allocation8 + $0x1c8] sm:$0xff]
        %v445 = vld [vmem:[#allocation8 + $0x1d0] sm:$0xff]
        %v446 = vld [vmem:[#allocation8 + $0x1d8] sm:$0xff]
        %v447 = vld [vmem:[#allocation8 + $0x1e0] sm:$0xff]
        %v448 = vld [vmem:[#allocation8 + $0x1e8] sm:$0xff]
        %v449 = vld [vmem:[#allocation8 + $0x1f0] sm:$0xff]
        %v450 = vld [vmem:[#allocation8 + $0x1f8] sm:$0xff]
        %v451 = vld [vmem:[#allocation8 + $0x200] sm:$0xff]
        %v452 = vld [vmem:[#allocation8 + $0x208] sm:$0xff]
        %v453 = vld [vmem:[#allocation8 + $0x210] sm:$0xff]
        %v454 = vld [vmem:[#allocation8 + $0x218] sm:$0xff]
        %v455 = vld [vmem:[#allocation8 + $0x220] sm:$0xff]
        %v456 = vld [vmem:[#allocation8 + $0x228] sm:$0xff]
        %v457 = vld [vmem:[#allocation8 + $0x230] sm:$0xff]
        %v458 = vld [vmem:[#allocation8 + $0x238] sm:$0xff]
        %v459 = vld [vmem:[#allocation8 + $0x240] sm:$0xff]
        %v460 = vld [vmem:[#allocation8 + $0x248] sm:$0xff]
        %v461 = vld [vmem:[#allocation8 + $0x250] sm:$0xff]
        %v462 = vld [vmem:[#allocation8 + $0x258] sm:$0xff]
        %v463 = vld [vmem:[#allocation8 + $0x260] sm:$0xff]
        %v464 = vld [vmem:[#allocation8 + $0x268] sm:$0xff]
        %v465 = vld [vmem:[#allocation8 + $0x270] sm:$0xff]
        %v466 = vld [vmem:[#allocation8 + $0x278] sm:$0xff]
        %v467 = vld [vmem:[#allocation8 + $0x280] sm:$0xff]
        %v468 = vld [vmem:[#allocation8 + $0x288] sm:$0xff]
        %v469 = vld [vmem:[#allocation8 + $0x290] sm:$0xff]
        %v470 = vld [vmem:[#allocation8 + $0x298] sm:$0xff]
        %v471 = vld [vmem:[#allocation8 + $0x2a0] sm:$0xff]
        %v472 = vld [vmem:[#allocation8 + $0x2a8] sm:$0xff]
        %v473 = vld [vmem:[#allocation8 + $0x2b0] sm:$0xff]
        %v474 = vld [vmem:[#allocation8 + $0x2b8] sm:$0xff]
        %v475 = vld [vmem:[#allocation8 + $0x2c0] sm:$0xff]
        %v476 = vld [vmem:[#allocation8 + $0x2c8] sm:$0xff]
        %v477 = vld [vmem:[#allocation8 + $0x2d0] sm:$0xff]
        %v478 = vld [vmem:[#allocation8 + $0x2d8] sm:$0xff]
        %v479 = vld [vmem:[#allocation8 + $0x2e0] sm:$0xff]
        %v480 = vld [vmem:[#allocation8 + $0x2e8] sm:$0xff]
        %v481 = vld [vmem:[#allocation8 + $0x2f0] sm:$0xff]
        %v482 = vld [vmem:[#allocation8 + $0x2f8] sm:$0xff]
        %v483 = vld [vmem:[#allocation10] sm:$0xff]
        %484 = vmatprep.subr.mxu0 0.0
        %485 = vmatpush1.msra.mxu0 %v402
        %486 = vmatprep.subr.mxu0 0.0
        %487 = vmatpush1.msra.mxu0 %v401
        %488 = vmatprep.subr.mxu0 0.0
        %489 = vmatpush1.msra.mxu0 %v400
        %490 = vmatprep.subr.mxu0 0.0
        %491 = vmatpush1.msra.mxu0 %v399
        %492 = vmatprep.subr.mxu0 0.0
        %493 = vmatpush1.msra.mxu0 %v398
        %494 = vmatprep.subr.mxu0 0.0
        %495 = vmatpush1.msra.mxu0 %v397
        %496 = vmatprep.subr.mxu0 0.0
        %497 = vmatpush1.msra.mxu0 %v396
        %498 = vmatprep.subr.mxu0 0.0
        %499 = vmatpush1.msra.mxu0 %v395
        %500 = vmatprep.subr.mxu0 0.0
        %501 = vmatpush1.msra.mxu0 %v394
        %502 = vmatprep.subr.mxu0 0.0
        %503 = vmatpush1.msra.mxu0 %v393
        %504 = vmatprep.subr.mxu0 0.0
        %505 = vmatpush1.msra.mxu0 %v392
        %506 = vmatprep.subr.mxu0 0.0
        %507 = vmatpush1.msra.mxu0 %v391
        %508 = vmatprep.subr.mxu0 0.0
        %509 = vmatpush1.msra.mxu0 %v390
        %510 = vmatprep.subr.mxu0 0.0
        %511 = vmatpush1.msra.mxu0 %v389
        %512 = vmatprep.subr.mxu0 0.0
        %513 = vmatpush1.msra.mxu0 %v388
        %514 = vmatprep.subr.mxu0 0.0
        %515 = vmatpush1.msra.mxu0 %v387
        %516 = vmatprep.subr.mxu0 0.0
        %517 = vmatpush2.msra.mxu0 0.0
        %518 = vmatprep.subr.mxu0 0.0
        %519 = vmatpush2.msra.mxu0 0.0
        %520 = vmatprep.subr.mxu0 0.0
        %521 = vmatpush2.msra.mxu0 0.0
        %522 = vmatprep.subr.mxu0 0.0
        %523 = vmatpush2.msra.mxu0 0.0
        %524 = vmatprep.subr.mxu0 0.0
        %525 = vmatpush2.msra.mxu0 0.0
        %526 = vmatprep.subr.mxu0 0.0
        %527 = vmatpush2.msra.mxu0 0.0
        %528 = vmatprep.subr.mxu0 0.0
        %529 = vmatpush2.msra.mxu0 0.0
        %530 = vmatprep.subr.mxu0 0.0
        %531 = vmatpush2.msra.mxu0 0.0
        %532 = vmatprep.subr.mxu0 0.0
        %533 = vmatpush2.msra.mxu0 0.0
        %534 = vmatprep.subr.mxu0 0.0
        %535 = vmatpush2.msra.mxu0 0.0
        %536 = vmatprep.subr.mxu0 0.0
        %537 = vmatpush2.msra.mxu0 0.0
        %538 = vmatprep.subr.mxu0 0.0
        %539 = vmatpush2.msra.mxu0 0.0
        %540 = vmatprep.subr.mxu0 0.0
        %541 = vmatpush2.msra.mxu0 0.0
        %542 = vmatprep.subr.mxu0 0.0
        %543 = vmatpush2.msra.mxu0 0.0
        %544 = vmatprep.subr.mxu0 0.0
        %545 = vmatpush2.msra.mxu0 0.0
        %546 = vmatprep.subr.mxu0 0.0
        %547 = vmatpush2.msra.mxu0 0.0
        %548 = vmatprep.mubr.f32.mxu0 0.0
        %549 = vmatmul.mubr.f32.gmra.mxu0 %v354
        %v550 = vpop.f32.mrf.mxu0
        %v551 = vadd.f32 0.0, %v550
        %v552 = vpop.f32.mrf.mxu0
        %553 = vmatprep.mubr.f32.mxu0 0.0
        %554 = vmatmul.mubr.f32.gmra.mxu0 %v355
        %v555 = vpop.f32.mrf.mxu0
        %v556 = vadd.f32 0.0, %v555
        %v557 = vpop.f32.mrf.mxu0
        %558 = vmatprep.mubr.f32.mxu0 0.0
        %559 = vmatmul.mubr.f32.gmra.mxu0 %v356
        %v560 = vpop.f32.mrf.mxu0
        %v561 = vadd.f32 0.0, %v560
        %v562 = vpop.f32.mrf.mxu0
        %563 = vmatprep.mubr.f32.mxu0 0.0
        %564 = vmatmul.mubr.f32.gmra.mxu0 %v357
        %v565 = vpop.f32.mrf.mxu0
        %v566 = vadd.f32 0.0, %v565
        %v567 = vpop.f32.mrf.mxu0
        %568 = vmatprep.mubr.f32.mxu0 0.0
        %569 = vmatmul.mubr.f32.gmra.mxu0 %v358
        %v570 = vpop.f32.mrf.mxu0
        %v571 = vadd.f32 0.0, %v570
        %v572 = vpop.f32.mrf.mxu0
        %573 = vmatprep.mubr.f32.mxu0 0.0
        %574 = vmatmul.mubr.f32.gmra.mxu0 %v359
        %v575 = vpop.f32.mrf.mxu0
        %v576 = vadd.f32 0.0, %v575
        %v577 = vpop.f32.mrf.mxu0
        %578 = vmatprep.mubr.f32.mxu0 0.0
        %579 = vmatmul.mubr.f32.gmra.mxu0 %v360
        %v580 = vpop.f32.mrf.mxu0
        %v581 = vadd.f32 0.0, %v580
        %v582 = vpop.f32.mrf.mxu0
        %583 = vmatprep.mubr.f32.mxu0 0.0
        %584 = vmatmul.mubr.f32.gmra.mxu0 %v361
        %v585 = vpop.f32.mrf.mxu0
        %v586 = vadd.f32 0.0, %v585
        %v587 = vpop.f32.mrf.mxu0
        %588 = vmatprep.mubr.f32.mxu0 0.0
        %589 = vmatmul.mubr.f32.gmra.mxu0 %v362
        %v590 = vpop.f32.mrf.mxu0
        %v591 = vadd.f32 0.0, %v590
        %v592 = vpop.f32.mrf.mxu0
        %593 = vmatprep.mubr.f32.mxu0 0.0
        %594 = vmatmul.mubr.f32.gmra.mxu0 %v363
        %v595 = vpop.f32.mrf.mxu0
        %v596 = vadd.f32 0.0, %v595
        %v597 = vpop.f32.mrf.mxu0
        %598 = vmatprep.mubr.f32.mxu0 0.0
        %599 = vmatmul.mubr.f32.gmra.mxu0 %v364
        %v600 = vpop.f32.mrf.mxu0
        %v601 = vadd.f32 0.0, %v600
        %v602 = vpop.f32.mrf.mxu0
        %603 = vmatprep.mubr.f32.mxu0 0.0
        %604 = vmatmul.mubr.f32.gmra.mxu0 %v365
        %v605 = vpop.f32.mrf.mxu0
        %v606 = vadd.f32 0.0, %v605
        %v607 = vpop.f32.mrf.mxu0
        %608 = vmatprep.mubr.f32.mxu0 0.0
        %609 = vmatmul.mubr.f32.gmra.mxu0 %v366
        %v610 = vpop.f32.mrf.mxu0
        %v611 = vadd.f32 0.0, %v610
        %v612 = vpop.f32.mrf.mxu0
        %613 = vmatprep.mubr.f32.mxu0 0.0
        %614 = vmatmul.mubr.f32.gmra.mxu0 %v367
        %v615 = vpop.f32.mrf.mxu0
        %v616 = vadd.f32 0.0, %v615
        %v617 = vpop.f32.mrf.mxu0
        %618 = vmatprep.mubr.f32.mxu0 0.0
        %619 = vmatmul.mubr.f32.gmra.mxu0 %v368
        %v620 = vpop.f32.mrf.mxu0
        %v621 = vadd.f32 0.0, %v620
        %v622 = vpop.f32.mrf.mxu0
        %623 = vmatprep.mubr.f32.mxu0 0.0
        %624 = vmatmul.mubr.f32.gmra.mxu0 %v369
        %v625 = vpop.f32.mrf.mxu0
        %v626 = vadd.f32 0.0, %v625
        %v627 = vpop.f32.mrf.mxu0
        %628 = vdwg.mxu0
        %v629 = vmax.f32 %v551, 0.0
        %v630 = vmax.f32 %v556, 0.0
        %v631 = vmax.f32 %v561, 0.0
        %v632 = vmax.f32 %v566, 0.0
        %v633 = vmax.f32 %v571, 0.0
        %v634 = vmax.f32 %v576, 0.0
        %v635 = vmax.f32 %v581, 0.0
        %v636 = vmax.f32 %v586, 0.0
        %v637 = vmax.f32 %v591, 0.0
        %v638 = vmax.f32 %v596, 0.0
        %v639 = vmax.f32 %v601, 0.0
        %v640 = vmax.f32 %v606, 0.0
        %v641 = vmax.f32 %v611, 0.0
        %v642 = vmax.f32 %v616, 0.0
        %v643 = vmax.f32 %v621, 0.0
        %v644 = vmax.f32 %v626, 0.0
        %645 = vmatprep.subr.mxu0 0.0
        %646 = vmatpush1.msra.mxu0 %v644
        %647 = vmatprep.subr.mxu0 0.0
        %648 = vmatpush1.msra.mxu0 %v643
        %649 = vmatprep.subr.mxu0 0.0
        %650 = vmatpush1.msra.mxu0 %v642
        %651 = vmatprep.subr.mxu0 0.0
        %652 = vmatpush1.msra.mxu0 %v641
        %653 = vmatprep.subr.mxu0 0.0
        %654 = vmatpush1.msra.mxu0 %v640
        %655 = vmatprep.subr.mxu0 0.0
        %656 = vmatpush1.msra.mxu0 %v639
        %657 = vmatprep.subr.mxu0 0.0
        %658 = vmatpush1.msra.mxu0 %v638
        %659 = vmatprep.subr.mxu0 0.0
        %660 = vmatpush1.msra.mxu0 %v637
        %661 = vmatprep.subr.mxu0 0.0
        %662 = vmatpush1.msra.mxu0 %v636
        %663 = vmatprep.subr.mxu0 0.0
        %664 = vmatpush1.msra.mxu0 %v635
        %665 = vmatprep.subr.mxu0 0.0
        %666 = vmatpush1.msra.mxu0 %v634
        %667 = vmatprep.subr.mxu0 0.0
        %668 = vmatpush1.msra.mxu0 %v633
        %669 = vmatprep.subr.mxu0 0.0
        %670 = vmatpush1.msra.mxu0 %v632
        %671 = vmatprep.subr.mxu0 0.0
        %672 = vmatpush1.msra.mxu0 %v631
        %673 = vmatprep.subr.mxu0 0.0
        %674 = vmatpush1.msra.mxu0 %v630
        %675 = vmatprep.subr.mxu0 0.0
        %676 = vmatpush1.msra.mxu0 %v629
        %677 = vmatprep.subr.mxu0 0.0
        %678 = vmatpush2.msra.mxu0 0.0
        %679 = vmatprep.subr.mxu0 0.0
        %680 = vmatpush2.msra.mxu0 0.0
        %681 = vmatprep.subr.mxu0 0.0
        %682 = vmatpush2.msra.mxu0 0.0
        %683 = vmatprep.subr.mxu0 0.0
        %684 = vmatpush2.msra.mxu0 0.0
        %685 = vmatprep.subr.mxu0 0.0
        %686 = vmatpush2.msra.mxu0 0.0
        %687 = vmatprep.subr.mxu0 0.0
        %688 = vmatpush2.msra.mxu0 0.0
        %689 = vmatprep.subr.mxu0 0.0
        %690 = vmatpush2.msra.mxu0 0.0
        %691 = vmatprep.subr.mxu0 0.0
        %692 = vmatpush2.msra.mxu0 0.0
        %693 = vmatprep.subr.mxu0 0.0
        %694 = vmatpush2.msra.mxu0 0.0
        %695 = vmatprep.subr.mxu0 0.0
        %696 = vmatpush2.msra.mxu0 0.0
        %697 = vmatprep.subr.mxu0 0.0
        %698 = vmatpush2.msra.mxu0 0.0
        %699 = vmatprep.subr.mxu0 0.0
        %700 = vmatpush2.msra.mxu0 0.0
        %701 = vmatprep.subr.mxu0 0.0
        %702 = vmatpush2.msra.mxu0 0.0
        %703 = vmatprep.subr.mxu0 0.0
        %704 = vmatpush2.msra.mxu0 0.0
        %705 = vmatprep.subr.mxu0 0.0
        %706 = vmatpush2.msra.mxu0 0.0
        %707 = vmatprep.subr.mxu0 0.0
        %708 = vmatpush2.msra.mxu0 0.0
        %709 = vmatprep.mubr.f32.mxu0 0.0
        %710 = vmatmul.mubr.f32.gmra.mxu0 %v370
        %v711 = vpop.f32.mrf.mxu0
        %v712 = vadd.f32 0.0, %v711
        %v713 = vpop.f32.mrf.mxu0
        %714 = vmatprep.mubr.f32.mxu0 0.0
        %715 = vmatmul.mubr.f32.gmra.mxu0 %v371
        %v716 = vpop.f32.mrf.mxu0
        %v717 = vadd.f32 0.0, %v716
        %v718 = vpop.f32.mrf.mxu0
        %719 = vmatprep.mubr.f32.mxu0 0.0
        %720 = vmatmul.mubr.f32.gmra.mxu0 %v372
        %v721 = vpop.f32.mrf.mxu0
        %v722 = vadd.f32 0.0, %v721
        %v723 = vpop.f32.mrf.mxu0
        %724 = vmatprep.mubr.f32.mxu0 0.0
        %725 = vmatmul.mubr.f32.gmra.mxu0 %v373
        %v726 = vpop.f32.mrf.mxu0
        %v727 = vadd.f32 0.0, %v726
        %v728 = vpop.f32.mrf.mxu0
        %729 = vmatprep.mubr.f32.mxu0 0.0
        %730 = vmatmul.mubr.f32.gmra.mxu0 %v374
        %v731 = vpop.f32.mrf.mxu0
        %v732 = vadd.f32 0.0, %v731
        %v733 = vpop.f32.mrf.mxu0
        %734 = vmatprep.mubr.f32.mxu0 0.0
        %735 = vmatmul.mubr.f32.gmra.mxu0 %v375
        %v736 = vpop.f32.mrf.mxu0
        %v737 = vadd.f32 0.0, %v736
        %v738 = vpop.f32.mrf.mxu0
        %739 = vmatprep.mubr.f32.mxu0 0.0
        %740 = vmatmul.mubr.f32.gmra.mxu0 %v376
        %v741 = vpop.f32.mrf.mxu0
        %v742 = vadd.f32 0.0, %v741
        %v743 = vpop.f32.mrf.mxu0
        %744 = vmatprep.mubr.f32.mxu0 0.0
        %745 = vmatmul.mubr.f32.gmra.mxu0 %v377
        %v746 = vpop.f32.mrf.mxu0
        %v747 = vadd.f32 0.0, %v746
        %v748 = vpop.f32.mrf.mxu0
        %749 = vmatprep.mubr.f32.mxu0 0.0
        %750 = vmatmul.mubr.f32.gmra.mxu0 %v378
        %v751 = vpop.f32.mrf.mxu0
        %v752 = vadd.f32 0.0, %v751
        %v753 = vpop.f32.mrf.mxu0
        %754 = vmatprep.mubr.f32.mxu0 0.0
        %755 = vmatmul.mubr.f32.gmra.mxu0 %v379
        %v756 = vpop.f32.mrf.mxu0
        %v757 = vadd.f32 0.0, %v756
        %v758 = vpop.f32.mrf.mxu0
        %759 = vmatprep.mubr.f32.mxu0 0.0
        %760 = vmatmul.mubr.f32.gmra.mxu0 %v380
        %v761 = vpop.f32.mrf.mxu0
        %v762 = vadd.f32 0.0, %v761
        %v763 = vpop.f32.mrf.mxu0
        %764 = vmatprep.mubr.f32.mxu0 0.0
        %765 = vmatmul.mubr.f32.gmra.mxu0 %v381
        %v766 = vpop.f32.mrf.mxu0
        %v767 = vadd.f32 0.0, %v766
        %v768 = vpop.f32.mrf.mxu0
        %769 = vmatprep.mubr.f32.mxu0 0.0
        %770 = vmatmul.mubr.f32.gmra.mxu0 %v382
        %v771 = vpop.f32.mrf.mxu0
        %v772 = vadd.f32 0.0, %v771
        %v773 = vpop.f32.mrf.mxu0
        %774 = vmatprep.mubr.f32.mxu0 0.0
        %775 = vmatmul.mubr.f32.gmra.mxu0 %v383
        %v776 = vpop.f32.mrf.mxu0
        %v777 = vadd.f32 0.0, %v776
        %v778 = vpop.f32.mrf.mxu0
        %779 = vmatprep.mubr.f32.mxu0 0.0
        %780 = vmatmul.mubr.f32.gmra.mxu0 %v384
        %v781 = vpop.f32.mrf.mxu0
        %v782 = vadd.f32 0.0, %v781
        %v783 = vpop.f32.mrf.mxu0
        %784 = vmatprep.mubr.f32.mxu0 0.0
        %785 = vmatmul.mubr.f32.gmra.mxu0 %v385
        %v786 = vpop.f32.mrf.mxu0
        %v787 = vadd.f32 0.0, %v786
        %v788 = vpop.f32.mrf.mxu0
        %789 = vdwg.mxu0
        %790 = vmatprep.subr.mxu0 0.0
        %791 = vmatpush1.msra.mxu0 %v418
        %792 = vmatprep.subr.mxu0 0.0
        %793 = vmatpush1.msra.mxu0 %v417
        %794 = vmatprep.subr.mxu0 0.0
        %795 = vmatpush1.msra.mxu0 %v416
        %796 = vmatprep.subr.mxu0 0.0
        %797 = vmatpush1.msra.mxu0 %v415
        %798 = vmatprep.subr.mxu0 0.0
        %799 = vmatpush1.msra.mxu0 %v414
        %800 = vmatprep.subr.mxu0 0.0
        %801 = vmatpush1.msra.mxu0 %v413
        %802 = vmatprep.subr.mxu0 0.0
        %803 = vmatpush1.msra.mxu0 %v412
        %804 = vmatprep.subr.mxu0 0.0
        %805 = vmatpush1.msra.mxu0 %v411
        %806 = vmatprep.subr.mxu0 0.0
        %807 = vmatpush1.msra.mxu0 %v410
        %808 = vmatprep.subr.mxu0 0.0
        %809 = vmatpush1.msra.mxu0 %v409
        %810 = vmatprep.subr.mxu0 0.0
        %811 = vmatpush1.msra.mxu0 %v408
        %812 = vmatprep.subr.mxu0 0.0
        %813 = vmatpush1.msra.mxu0 %v407
        %814 = vmatprep.subr.mxu0 0.0
        %815 = vmatpush1.msra.mxu0 %v406
        %816 = vmatprep.subr.mxu0 0.0
        %817 = vmatpush1.msra.mxu0 %v405
        %818 = vmatprep.subr.mxu0 0.0
        %819 = vmatpush1.msra.mxu0 %v404
        %820 = vmatprep.subr.mxu0 0.0
        %821 = vmatpush1.msra.mxu0 %v403
        %822 = vmatprep.subr.mxu0 0.0
        %823 = vmatpush2.msra.mxu0 0.0
        %824 = vmatprep.subr.mxu0 0.0
        %825 = vmatpush2.msra.mxu0 0.0
        %826 = vmatprep.subr.mxu0 0.0
        %827 = vmatpush2.msra.mxu0 0.0
        %828 = vmatprep.subr.mxu0 0.0
        %829 = vmatpush2.msra.mxu0 0.0
        %830 = vmatprep.subr.mxu0 0.0
        %831 = vmatpush2.msra.mxu0 0.0
        %832 = vmatprep.subr.mxu0 0.0
        %833 = vmatpush2.msra.mxu0 0.0
        %834 = vmatprep.subr.mxu0 0.0
        %835 = vmatpush2.msra.mxu0 0.0
        %836 = vmatprep.subr.mxu0 0.0
        %837 = vmatpush2.msra.mxu0 0.0
        %838 = vmatprep.subr.mxu0 0.0
        %839 = vmatpush2.msra.mxu0 0.0
        %840 = vmatprep.subr.mxu0 0.0
        %841 = vmatpush2.msra.mxu0 0.0
        %842 = vmatprep.subr.mxu0 0.0
        %843 = vmatpush2.msra.mxu0 0.0
        %844 = vmatprep.subr.mxu0 0.0
        %845 = vmatpush2.msra.mxu0 0.0
        %846 = vmatprep.subr.mxu0 0.0
        %847 = vmatpush2.msra.mxu0 0.0
        %848 = vmatprep.subr.mxu0 0.0
        %849 = vmatpush2.msra.mxu0 0.0
        %850 = vmatprep.subr.mxu0 0.0
        %851 = vmatpush2.msra.mxu0 0.0
        %852 = vmatprep.subr.mxu0 0.0
        %853 = vmatpush2.msra.mxu0 0.0
        %854 = vmatprep.mubr.f32.mxu0 0.0
        %855 = vmatmul.mubr.f32.gmra.mxu0 %v712
        %v856 = vpop.f32.mrf.mxu0
        %v857 = vadd.f32 0.0, %v856
        %v858 = vpop.f32.mrf.mxu0
        %859 = vmatprep.mubr.f32.mxu0 0.0
        %860 = vmatmul.mubr.f32.gmra.mxu0 %v717
        %v861 = vpop.f32.mrf.mxu0
        %v862 = vadd.f32 0.0, %v861
        %v863 = vpop.f32.mrf.mxu0
        %864 = vmatprep.mubr.f32.mxu0 0.0
        %865 = vmatmul.mubr.f32.gmra.mxu0 %v722
        %v866 = vpop.f32.mrf.mxu0
        %v867 = vadd.f32 0.0, %v866
        %v868 = vpop.f32.mrf.mxu0
        %869 = vmatprep.mubr.f32.mxu0 0.0
        %870 = vmatmul.mubr.f32.gmra.mxu0 %v727
        %v871 = vpop.f32.mrf.mxu0
        %v872 = vadd.f32 0.0, %v871
        %v873 = vpop.f32.mrf.mxu0
        %874 = vmatprep.mubr.f32.mxu0 0.0
        %875 = vmatmul.mubr.f32.gmra.mxu0 %v732
        %v876 = vpop.f32.mrf.mxu0
        %v877 = vadd.f32 0.0, %v876
        %v878 = vpop.f32.mrf.mxu0
        %879 = vmatprep.mubr.f32.mxu0 0.0
        %880 = vmatmul.mubr.f32.gmra.mxu0 %v737
        %v881 = vpop.f32.mrf.mxu0
        %v882 = vadd.f32 0.0, %v881
        %v883 = vpop.f32.mrf.mxu0
        %884 = vmatprep.mubr.f32.mxu0 0.0
        %885 = vmatmul.mubr.f32.gmra.mxu0 %v742
        %v886 = vpop.f32.mrf.mxu0
        %v887 = vadd.f32 0.0, %v886
        %v888 = vpop.f32.mrf.mxu0
        %889 = vmatprep.mubr.f32.mxu0 0.0
        %890 = vmatmul.mubr.f32.gmra.mxu0 %v747
        %v891 = vpop.f32.mrf.mxu0
        %v892 = vadd.f32 0.0, %v891
        %v893 = vpop.f32.mrf.mxu0
        %894 = vmatprep.mubr.f32.mxu0 0.0
        %895 = vmatmul.mubr.f32.gmra.mxu0 %v752
        %v896 = vpop.f32.mrf.mxu0
        %v897 = vadd.f32 0.0, %v896
        %v898 = vpop.f32.mrf.mxu0
        %899 = vmatprep.mubr.f32.mxu0 0.0
        %900 = vmatmul.mubr.f32.gmra.mxu0 %v757
        %v901 = vpop.f32.mrf.mxu0
        %v902 = vadd.f32 0.0, %v901
        %v903 = vpop.f32.mrf.mxu0
        %904 = vmatprep.mubr.f32.mxu0 0.0
        %905 = vmatmul.mubr.f32.gmra.mxu0 %v762
        %v906 = vpop.f32.mrf.mxu0
        %v907 = vadd.f32 0.0, %v906
        %v908 = vpop.f32.mrf.mxu0
        %909 = vmatprep.mubr.f32.mxu0 0.0
        %910 = vmatmul.mubr.f32.gmra.mxu0 %v767
        %v911 = vpop.f32.mrf.mxu0
        %v912 = vadd.f32 0.0, %v911
        %v913 = vpop.f32.mrf.mxu0
        %914 = vmatprep.mubr.f32.mxu0 0.0
        %915 = vmatmul.mubr.f32.gmra.mxu0 %v772
        %v916 = vpop.f32.mrf.mxu0
        %v917 = vadd.f32 0.0, %v916
        %v918 = vpop.f32.mrf.mxu0
        %919 = vmatprep.mubr.f32.mxu0 0.0
        %920 = vmatmul.mubr.f32.gmra.mxu0 %v777
        %v921 = vpop.f32.mrf.mxu0
        %v922 = vadd.f32 0.0, %v921
        %v923 = vpop.f32.mrf.mxu0
        %924 = vmatprep.mubr.f32.mxu0 0.0
        %925 = vmatmul.mubr.f32.gmra.mxu0 %v782
        %v926 = vpop.f32.mrf.mxu0
        %v927 = vadd.f32 0.0, %v926
        %v928 = vpop.f32.mrf.mxu0
        %929 = vmatprep.mubr.f32.mxu0 0.0
        %930 = vmatmul.mubr.f32.gmra.mxu0 %v787
        %v931 = vpop.f32.mrf.mxu0
        %v932 = vadd.f32 0.0, %v931
        %v933 = vpop.f32.mrf.mxu0
        %934 = vdwg.mxu0
        %v935 = vadd.f32 %v551, %v857
        %v936 = vadd.f32 %v556, %v862
        %v937 = vadd.f32 %v561, %v867
        %v938 = vadd.f32 %v566, %v872
        %v939 = vadd.f32 %v571, %v877
        %v940 = vadd.f32 %v576, %v882
        %v941 = vadd.f32 %v581, %v887
        %v942 = vadd.f32 %v586, %v892
        %v943 = vadd.f32 %v591, %v897
        %v944 = vadd.f32 %v596, %v902
        %v945 = vadd.f32 %v601, %v907
        %v946 = vadd.f32 %v606, %v912
        %v947 = vadd.f32 %v611, %v917
        %v948 = vadd.f32 %v616, %v922
        %v949 = vadd.f32 %v621, %v927
        %v950 = vadd.f32 %v626, %v932
        %v951 = vmax.f32 %v935, 0.0
        %v952 = vmax.f32 %v936, 0.0
        %v953 = vmax.f32 %v937, 0.0
        %v954 = vmax.f32 %v938, 0.0
        %v955 = vmax.f32 %v939, 0.0
        %v956 = vmax.f32 %v940, 0.0
        %v957 = vmax.f32 %v941, 0.0
        %v958 = vmax.f32 %v942, 0.0
        %v959 = vmax.f32 %v943, 0.0
        %v960 = vmax.f32 %v944, 0.0
        %v961 = vmax.f32 %v945, 0.0
        %v962 = vmax.f32 %v946, 0.0
        %v963 = vmax.f32 %v947, 0.0
        %v964 = vmax.f32 %v948, 0.0
        %v965 = vmax.f32 %v949, 0.0
        %v966 = vmax.f32 %v950, 0.0
        %967 = vmatprep.subr.mxu0 0.0
        %968 = vmatpush1.msra.mxu0 %v966
        %969 = vmatprep.subr.mxu0 0.0
        %970 = vmatpush1.msra.mxu0 %v965
        %971 = vmatprep.subr.mxu0 0.0
        %972 = vmatpush1.msra.mxu0 %v964
        %973 = vmatprep.subr.mxu0 0.0
        %974 = vmatpush1.msra.mxu0 %v963
        %975 = vmatprep.subr.mxu0 0.0
        %976 = vmatpush1.msra.mxu0 %v962
        %977 = vmatprep.subr.mxu0 0.0
        %978 = vmatpush1.msra.mxu0 %v961
        %979 = vmatprep.subr.mxu0 0.0
        %980 = vmatpush1.msra.mxu0 %v960
        %981 = vmatprep.subr.mxu0 0.0
        %982 = vmatpush1.msra.mxu0 %v959
        %983 = vmatprep.subr.mxu0 0.0
        %984 = vmatpush1.msra.mxu0 %v958
        %985 = vmatprep.subr.mxu0 0.0
        %986 = vmatpush1.msra.mxu0 %v957
        %987 = vmatprep.subr.mxu0 0.0
        %988 = vmatpush1.msra.mxu0 %v956
        %989 = vmatprep.subr.mxu0 0.0
        %990 = vmatpush1.msra.mxu0 %v955
        %991 = vmatprep.subr.mxu0 0.0
        %992 = vmatpush1.msra.mxu0 %v954
        %993 = vmatprep.subr.mxu0 0.0
        %994 = vmatpush1.msra.mxu0 %v953
        %995 = vmatprep.subr.mxu0 0.0
        %996 = vmatpush1.msra.mxu0 %v952
        %997 = vmatprep.subr.mxu0 0.0
        %998 = vmatpush1.msra.mxu0 %v951
        %999 = vmatprep.subr.mxu0 0.0
        %1000 = vmatpush2.msra.mxu0 0.0
        %1001 = vmatprep.subr.mxu0 0.0
        %1002 = vmatpush2.msra.mxu0 0.0
        %1003 = vmatprep.subr.mxu0 0.0
        %1004 = vmatpush2.msra.mxu0 0.0
        %1005 = vmatprep.subr.mxu0 0.0
        %1006 = vmatpush2.msra.mxu0 0.0
        %1007 = vmatprep.subr.mxu0 0.0
        %1008 = vmatpush2.msra.mxu0 0.0
        %1009 = vmatprep.subr.mxu0 0.0
        %1010 = vmatpush2.msra.mxu0 0.0
        %1011 = vmatprep.subr.mxu0 0.0
        %1012 = vmatpush2.msra.mxu0 0.0
        %1013 = vmatprep.subr.mxu0 0.0
        %1014 = vmatpush2.msra.mxu0 0.0
        %1015 = vmatprep.subr.mxu0 0.0
        %1016 = vmatpush2.msra.mxu0 0.0
        %1017 = vmatprep.subr.mxu0 0.0
        %1018 = vmatpush2.msra.mxu0 0.0
        %1019 = vmatprep.subr.mxu0 0.0
        %1020 = vmatpush2.msra.mxu0 0.0
        %1021 = vmatprep.subr.mxu0 0.0
        %1022 = vmatpush2.msra.mxu0 0.0
        %1023 = vmatprep.subr.mxu0 0.0
        %1024 = vmatpush2.msra.mxu0 0.0
        %1025 = vmatprep.subr.mxu0 0.0
        %1026 = vmatpush2.msra.mxu0 0.0
        %1027 = vmatprep.subr.mxu0 0.0
        %1028 = vmatpush2.msra.mxu0 0.0
        %1029 = vmatprep.subr.mxu0 0.0
        %1030 = vmatpush2.msra.mxu0 0.0
        %1031 = vmatprep.mubr.f32.mxu0 0.0
        %1032 = vmatmul.mubr.f32.gmra.mxu0 %v370
        %v1033 = vpop.f32.mrf.mxu0
        %v1034 = vadd.f32 0.0, %v1033
        %v1035 = vpop.f32.mrf.mxu0
        %1036 = vmatprep.mubr.f32.mxu0 0.0
        %1037 = vmatmul.mubr.f32.gmra.mxu0 %v371
        %v1038 = vpop.f32.mrf.mxu0
        %v1039 = vadd.f32 0.0, %v1038
        %v1040 = vpop.f32.mrf.mxu0
        %1041 = vmatprep.mubr.f32.mxu0 0.0
        %1042 = vmatmul.mubr.f32.gmra.mxu0 %v372
        %v1043 = vpop.f32.mrf.mxu0
        %v1044 = vadd.f32 0.0, %v1043
        %v1045 = vpop.f32.mrf.mxu0
        %1046 = vmatprep.mubr.f32.mxu0 0.0
        %1047 = vmatmul.mubr.f32.gmra.mxu0 %v373
        %v1048 = vpop.f32.mrf.mxu0
        %v1049 = vadd.f32 0.0, %v1048
        %v1050 = vpop.f32.mrf.mxu0
        %1051 = vmatprep.mubr.f32.mxu0 0.0
        %1052 = vmatmul.mubr.f32.gmra.mxu0 %v374
        %v1053 = vpop.f32.mrf.mxu0
        %v1054 = vadd.f32 0.0, %v1053
        %v1055 = vpop.f32.mrf.mxu0
        %1056 = vmatprep.mubr.f32.mxu0 0.0
        %1057 = vmatmul.mubr.f32.gmra.mxu0 %v375
        %v1058 = vpop.f32.mrf.mxu0
        %v1059 = vadd.f32 0.0, %v1058
        %v1060 = vpop.f32.mrf.mxu0
        %1061 = vmatprep.mubr.f32.mxu0 0.0
        %1062 = vmatmul.mubr.f32.gmra.mxu0 %v376
        %v1063 = vpop.f32.mrf.mxu0
        %v1064 = vadd.f32 0.0, %v1063
        %v1065 = vpop.f32.mrf.mxu0
        %1066 = vmatprep.mubr.f32.mxu0 0.0
        %1067 = vmatmul.mubr.f32.gmra.mxu0 %v377
        %v1068 = vpop.f32.mrf.mxu0
        %v1069 = vadd.f32 0.0, %v1068
        %v1070 = vpop.f32.mrf.mxu0
        %1071 = vmatprep.mubr.f32.mxu0 0.0
        %1072 = vmatmul.mubr.f32.gmra.mxu0 %v378
        %v1073 = vpop.f32.mrf.mxu0
        %v1074 = vadd.f32 0.0, %v1073
        %v1075 = vpop.f32.mrf.mxu0
        %1076 = vmatprep.mubr.f32.mxu0 0.0
        %1077 = vmatmul.mubr.f32.gmra.mxu0 %v379
        %v1078 = vpop.f32.mrf.mxu0
        %v1079 = vadd.f32 0.0, %v1078
        %v1080 = vpop.f32.mrf.mxu0
        %1081 = vmatprep.mubr.f32.mxu0 0.0
        %1082 = vmatmul.mubr.f32.gmra.mxu0 %v380
        %v1083 = vpop.f32.mrf.mxu0
        %v1084 = vadd.f32 0.0, %v1083
        %v1085 = vpop.f32.mrf.mxu0
        %1086 = vmatprep.mubr.f32.mxu0 0.0
        %1087 = vmatmul.mubr.f32.gmra.mxu0 %v381
        %v1088 = vpop.f32.mrf.mxu0
        %v1089 = vadd.f32 0.0, %v1088
        %v1090 = vpop.f32.mrf.mxu0
        %1091 = vmatprep.mubr.f32.mxu0 0.0
        %1092 = vmatmul.mubr.f32.gmra.mxu0 %v382
        %v1093 = vpop.f32.mrf.mxu0
        %v1094 = vadd.f32 0.0, %v1093
        %v1095 = vpop.f32.mrf.mxu0
        %1096 = vmatprep.mubr.f32.mxu0 0.0
        %1097 = vmatmul.mubr.f32.gmra.mxu0 %v383
        %v1098 = vpop.f32.mrf.mxu0
        %v1099 = vadd.f32 0.0, %v1098
        %v1100 = vpop.f32.mrf.mxu0
        %1101 = vmatprep.mubr.f32.mxu0 0.0
        %1102 = vmatmul.mubr.f32.gmra.mxu0 %v384
        %v1103 = vpop.f32.mrf.mxu0
        %v1104 = vadd.f32 0.0, %v1103
        %v1105 = vpop.f32.mrf.mxu0
        %1106 = vmatprep.mubr.f32.mxu0 0.0
        %1107 = vmatmul.mubr.f32.gmra.mxu0 %v385
        %v1108 = vpop.f32.mrf.mxu0
        %v1109 = vadd.f32 0.0, %v1108
        %v1110 = vpop.f32.mrf.mxu0
        %1111 = vdwg.mxu0
        %1112 = vmatprep.subr.mxu0 0.0
        %1113 = vmatpush1.msra.mxu0 %v418
        %1114 = vmatprep.subr.mxu0 0.0
        %1115 = vmatpush1.msra.mxu0 %v417
        %1116 = vmatprep.subr.mxu0 0.0
        %1117 = vmatpush1.msra.mxu0 %v416
        %1118 = vmatprep.subr.mxu0 0.0
        %1119 = vmatpush1.msra.mxu0 %v415
        %1120 = vmatprep.subr.mxu0 0.0
        %1121 = vmatpush1.msra.mxu0 %v414
        %1122 = vmatprep.subr.mxu0 0.0
        %1123 = vmatpush1.msra.mxu0 %v413
        %1124 = vmatprep.subr.mxu0 0.0
        %1125 = vmatpush1.msra.mxu0 %v412
        %1126 = vmatprep.subr.mxu0 0.0
        %1127 = vmatpush1.msra.mxu0 %v411
        %1128 = vmatprep.subr.mxu0 0.0
        %1129 = vmatpush1.msra.mxu0 %v410
        %1130 = vmatprep.subr.mxu0 0.0
        %1131 = vmatpush1.msra.mxu0 %v409
        %1132 = vmatprep.subr.mxu0 0.0
        %1133 = vmatpush1.msra.mxu0 %v408
        %1134 = vmatprep.subr.mxu0 0.0
        %1135 = vmatpush1.msra.mxu0 %v407
        %1136 = vmatprep.subr.mxu0 0.0
        %1137 = vmatpush1.msra.mxu0 %v406
        %1138 = vmatprep.subr.mxu0 0.0
        %1139 = vmatpush1.msra.mxu0 %v405
        %1140 = vmatprep.subr.mxu0 0.0
        %1141 = vmatpush1.msra.mxu0 %v404
        %1142 = vmatprep.subr.mxu0 0.0
        %1143 = vmatpush1.msra.mxu0 %v403
        %1144 = vmatprep.subr.mxu0 0.0
        %1145 = vmatpush2.msra.mxu0 0.0
        %1146 = vmatprep.subr.mxu0 0.0
        %1147 = vmatpush2.msra.mxu0 0.0
        %1148 = vmatprep.subr.mxu0 0.0
        %1149 = vmatpush2.msra.mxu0 0.0
        %1150 = vmatprep.subr.mxu0 0.0
        %1151 = vmatpush2.msra.mxu0 0.0
        %1152 = vmatprep.subr.mxu0 0.0
        %1153 = vmatpush2.msra.mxu0 0.0
        %1154 = vmatprep.subr.mxu0 0.0
        %1155 = vmatpush2.msra.mxu0 0.0
        %1156 = vmatprep.subr.mxu0 0.0
        %1157 = vmatpush2.msra.mxu0 0.0
        %1158 = vmatprep.subr.mxu0 0.0
        %1159 = vmatpush2.msra.mxu0 0.0
        %1160 = vmatprep.subr.mxu0 0.0
        %1161 = vmatpush2.msra.mxu0 0.0
        %1162 = vmatprep.subr.mxu0 0.0
        %1163 = vmatpush2.msra.mxu0 0.0
        %1164 = vmatprep.subr.mxu0 0.0
        %1165 = vmatpush2.msra.mxu0 0.0
        %1166 = vmatprep.subr.mxu0 0.0
        %1167 = vmatpush2.msra.mxu0 0.0
        %1168 = vmatprep.subr.mxu0 0.0
        %1169 = vmatpush2.msra.mxu0 0.0
        %1170 = vmatprep.subr.mxu0 0.0
        %1171 = vmatpush2.msra.mxu0 0.0
        %1172 = vmatprep.subr.mxu0 0.0
        %1173 = vmatpush2.msra.mxu0 0.0
        %1174 = vmatprep.subr.mxu0 0.0
        %1175 = vmatpush2.msra.mxu0 0.0
        %1176 = vmatprep.mubr.f32.mxu0 0.0
        %1177 = vmatmul.mubr.f32.gmra.mxu0 %v1034
        %v1178 = vpop.f32.mrf.mxu0
        %v1179 = vadd.f32 0.0, %v1178
        %v1180 = vpop.f32.mrf.mxu0
        %1181 = vmatprep.mubr.f32.mxu0 0.0
        %1182 = vmatmul.mubr.f32.gmra.mxu0 %v1039
        %v1183 = vpop.f32.mrf.mxu0
        %v1184 = vadd.f32 0.0, %v1183
        %v1185 = vpop.f32.mrf.mxu0
        %1186 = vmatprep.mubr.f32.mxu0 0.0
        %1187 = vmatmul.mubr.f32.gmra.mxu0 %v1044
        %v1188 = vpop.f32.mrf.mxu0
        %v1189 = vadd.f32 0.0, %v1188
        %v1190 = vpop.f32.mrf.mxu0
        %1191 = vmatprep.mubr.f32.mxu0 0.0
        %1192 = vmatmul.mubr.f32.gmra.mxu0 %v1049
        %v1193 = vpop.f32.mrf.mxu0
        %v1194 = vadd.f32 0.0, %v1193
        %v1195 = vpop.f32.mrf.mxu0
        %1196 = vmatprep.mubr.f32.mxu0 0.0
        %1197 = vmatmul.mubr.f32.gmra.mxu0 %v1054
        %v1198 = vpop.f32.mrf.mxu0
        %v1199 = vadd.f32 0.0, %v1198
        %v1200 = vpop.f32.mrf.mxu0
        %1201 = vmatprep.mubr.f32.mxu0 0.0
        %1202 = vmatmul.mubr.f32.gmra.mxu0 %v1059
        %v1203 = vpop.f32.mrf.mxu0
        %v1204 = vadd.f32 0.0, %v1203
        %v1205 = vpop.f32.mrf.mxu0
        %1206 = vmatprep.mubr.f32.mxu0 0.0
        %1207 = vmatmul.mubr.f32.gmra.mxu0 %v1064
        %v1208 = vpop.f32.mrf.mxu0
        %v1209 = vadd.f32 0.0, %v1208
        %v1210 = vpop.f32.mrf.mxu0
        %1211 = vmatprep.mubr.f32.mxu0 0.0
        %1212 = vmatmul.mubr.f32.gmra.mxu0 %v1069
        %v1213 = vpop.f32.mrf.mxu0
        %v1214 = vadd.f32 0.0, %v1213
        %v1215 = vpop.f32.mrf.mxu0
        %1216 = vmatprep.mubr.f32.mxu0 0.0
        %1217 = vmatmul.mubr.f32.gmra.mxu0 %v1074
        %v1218 = vpop.f32.mrf.mxu0
        %v1219 = vadd.f32 0.0, %v1218
        %v1220 = vpop.f32.mrf.mxu0
        %1221 = vmatprep.mubr.f32.mxu0 0.0
        %1222 = vmatmul.mubr.f32.gmra.mxu0 %v1079
        %v1223 = vpop.f32.mrf.mxu0
        %v1224 = vadd.f32 0.0, %v1223
        %v1225 = vpop.f32.mrf.mxu0
        %1226 = vmatprep.mubr.f32.mxu0 0.0
        %1227 = vmatmul.mubr.f32.gmra.mxu0 %v1084
        %v1228 = vpop.f32.mrf.mxu0
        %v1229 = vadd.f32 0.0, %v1228
        %v1230 = vpop.f32.mrf.mxu0
        %1231 = vmatprep.mubr.f32.mxu0 0.0
        %1232 = vmatmul.mubr.f32.gmra.mxu0 %v1089
        %v1233 = vpop.f32.mrf.mxu0
        %v1234 = vadd.f32 0.0, %v1233
        %v1235 = vpop.f32.mrf.mxu0
        %1236 = vmatprep.mubr.f32.mxu0 0.0
        %1237 = vmatmul.mubr.f32.gmra.mxu0 %v1094
        %v1238 = vpop.f32.mrf.mxu0
        %v1239 = vadd.f32 0.0, %v1238
        %v1240 = vpop.f32.mrf.mxu0
        %1241 = vmatprep.mubr.f32.mxu0 0.0
        %1242 = vmatmul.mubr.f32.gmra.mxu0 %v1099
        %v1243 = vpop.f32.mrf.mxu0
        %v1244 = vadd.f32 0.0, %v1243
        %v1245 = vpop.f32.mrf.mxu0
        %1246 = vmatprep.mubr.f32.mxu0 0.0
        %1247 = vmatmul.mubr.f32.gmra.mxu0 %v1104
        %v1248 = vpop.f32.mrf.mxu0
        %v1249 = vadd.f32 0.0, %v1248
        %v1250 = vpop.f32.mrf.mxu0
        %1251 = vmatprep.mubr.f32.mxu0 0.0
        %1252 = vmatmul.mubr.f32.gmra.mxu0 %v1109
        %v1253 = vpop.f32.mrf.mxu0
        %v1254 = vadd.f32 0.0, %v1253
        %v1255 = vpop.f32.mrf.mxu0
        %1256 = vdwg.mxu0
        %v1257 = vadd.f32 %v551, %v1179
        %v1258 = vadd.f32 %v556, %v1184
        %v1259 = vadd.f32 %v561, %v1189
        %v1260 = vadd.f32 %v566, %v1194
        %v1261 = vadd.f32 %v571, %v1199
        %v1262 = vadd.f32 %v576, %v1204
        %v1263 = vadd.f32 %v581, %v1209
        %v1264 = vadd.f32 %v586, %v1214
        %v1265 = vadd.f32 %v591, %v1219
        %v1266 = vadd.f32 %v596, %v1224
        %v1267 = vadd.f32 %v601, %v1229
        %v1268 = vadd.f32 %v606, %v1234
        %v1269 = vadd.f32 %v611, %v1239
        %v1270 = vadd.f32 %v616, %v1244
        %v1271 = vadd.f32 %v621, %v1249
        %v1272 = vadd.f32 %v626, %v1254
        %v1273 = vmax.f32 %v1257, 0.0
        %v1274 = vmax.f32 %v1258, 0.0
        %v1275 = vmax.f32 %v1259, 0.0
        %v1276 = vmax.f32 %v1260, 0.0
        %v1277 = vmax.f32 %v1261, 0.0
        %v1278 = vmax.f32 %v1262, 0.0
        %v1279 = vmax.f32 %v1263, 0.0
        %v1280 = vmax.f32 %v1264, 0.0
        %v1281 = vmax.f32 %v1265, 0.0
        %v1282 = vmax.f32 %v1266, 0.0
        %v1283 = vmax.f32 %v1267, 0.0
        %v1284 = vmax.f32 %v1268, 0.0
        %v1285 = vmax.f32 %v1269, 0.0
        %v1286 = vmax.f32 %v1270, 0.0
        %v1287 = vmax.f32 %v1271, 0.0
        %v1288 = vmax.f32 %v1272, 0.0
        %1289 = vmatprep.subr.mxu0 0.0
        %1290 = vmatpush1.msra.mxu0 %v1288
        %1291 = vmatprep.subr.mxu0 0.0
        %1292 = vmatpush1.msra.mxu0 %v1287
        %1293 = vmatprep.subr.mxu0 0.0
        %1294 = vmatpush1.msra.mxu0 %v1286
        %1295 = vmatprep.subr.mxu0 0.0
        %1296 = vmatpush1.msra.mxu0 %v1285
        %1297 = vmatprep.subr.mxu0 0.0
        %1298 = vmatpush1.msra.mxu0 %v1284
        %1299 = vmatprep.subr.mxu0 0.0
        %1300 = vmatpush1.msra.mxu0 %v1283
        %1301 = vmatprep.subr.mxu0 0.0
        %1302 = vmatpush1.msra.mxu0 %v1282
        %1303 = vmatprep.subr.mxu0 0.0
        %1304 = vmatpush1.msra.mxu0 %v1281
        %1305 = vmatprep.subr.mxu0 0.0
        %1306 = vmatpush1.msra.mxu0 %v1280
        %1307 = vmatprep.subr.mxu0 0.0
        %1308 = vmatpush1.msra.mxu0 %v1279
        %1309 = vmatprep.subr.mxu0 0.0
        %1310 = vmatpush1.msra.mxu0 %v1278
        %1311 = vmatprep.subr.mxu0 0.0
        %1312 = vmatpush1.msra.mxu0 %v1277
        %1313 = vmatprep.subr.mxu0 0.0
        %1314 = vmatpush1.msra.mxu0 %v1276
        %1315 = vmatprep.subr.mxu0 0.0
        %1316 = vmatpush1.msra.mxu0 %v1275
        %1317 = vmatprep.subr.mxu0 0.0
        %1318 = vmatpush1.msra.mxu0 %v1274
        %1319 = vmatprep.subr.mxu0 0.0
        %1320 = vmatpush1.msra.mxu0 %v1273
        %1321 = vmatprep.subr.mxu0 0.0
        %1322 = vmatpush2.msra.mxu0 0.0
        %1323 = vmatprep.subr.mxu0 0.0
        %1324 = vmatpush2.msra.mxu0 0.0
        %1325 = vmatprep.subr.mxu0 0.0
        %1326 = vmatpush2.msra.mxu0 0.0
        %1327 = vmatprep.subr.mxu0 0.0
        %1328 = vmatpush2.msra.mxu0 0.0
        %1329 = vmatprep.subr.mxu0 0.0
        %1330 = vmatpush2.msra.mxu0 0.0
        %1331 = vmatprep.subr.mxu0 0.0
        %1332 = vmatpush2.msra.mxu0 0.0
        %1333 = vmatprep.subr.mxu0 0.0
        %1334 = vmatpush2.msra.mxu0 0.0
        %1335 = vmatprep.subr.mxu0 0.0
        %1336 = vmatpush2.msra.mxu0 0.0
        %1337 = vmatprep.subr.mxu0 0.0
        %1338 = vmatpush2.msra.mxu0 0.0
        %1339 = vmatprep.subr.mxu0 0.0
        %1340 = vmatpush2.msra.mxu0 0.0
        %1341 = vmatprep.subr.mxu0 0.0
        %1342 = vmatpush2.msra.mxu0 0.0
        %1343 = vmatprep.subr.mxu0 0.0
        %1344 = vmatpush2.msra.mxu0 0.0
        %1345 = vmatprep.subr.mxu0 0.0
        %1346 = vmatpush2.msra.mxu0 0.0
        %1347 = vmatprep.subr.mxu0 0.0
        %1348 = vmatpush2.msra.mxu0 0.0
        %1349 = vmatprep.subr.mxu0 0.0
        %1350 = vmatpush2.msra.mxu0 0.0
        %1351 = vmatprep.subr.mxu0 0.0
        %1352 = vmatpush2.msra.mxu0 0.0
        %1353 = vmatprep.mubr.f32.mxu0 0.0
        %1354 = vmatmul.mubr.f32.gmra.mxu0 %v370
        %v1355 = vpop.f32.mrf.mxu0
        %v1356 = vadd.f32 0.0, %v1355
        %v1357 = vpop.f32.mrf.mxu0
        %1358 = vmatprep.mubr.f32.mxu0 0.0
        %1359 = vmatmul.mubr.f32.gmra.mxu0 %v371
        %v1360 = vpop.f32.mrf.mxu0
        %v1361 = vadd.f32 0.0, %v1360
        %v1362 = vpop.f32.mrf.mxu0
        %1363 = vmatprep.mubr.f32.mxu0 0.0
        %1364 = vmatmul.mubr.f32.gmra.mxu0 %v372
        %v1365 = vpop.f32.mrf.mxu0
        %v1366 = vadd.f32 0.0, %v1365
        %v1367 = vpop.f32.mrf.mxu0
        %1368 = vmatprep.mubr.f32.mxu0 0.0
        %1369 = vmatmul.mubr.f32.gmra.mxu0 %v373
        %v1370 = vpop.f32.mrf.mxu0
        %v1371 = vadd.f32 0.0, %v1370
        %v1372 = vpop.f32.mrf.mxu0
        %1373 = vmatprep.mubr.f32.mxu0 0.0
        %1374 = vmatmul.mubr.f32.gmra.mxu0 %v374
        %v1375 = vpop.f32.mrf.mxu0
        %v1376 = vadd.f32 0.0, %v1375
        %v1377 = vpop.f32.mrf.mxu0
        %1378 = vmatprep.mubr.f32.mxu0 0.0
        %1379 = vmatmul.mubr.f32.gmra.mxu0 %v375
        %v1380 = vpop.f32.mrf.mxu0
        %v1381 = vadd.f32 0.0, %v1380
        %v1382 = vpop.f32.mrf.mxu0
        %1383 = vmatprep.mubr.f32.mxu0 0.0
        %1384 = vmatmul.mubr.f32.gmra.mxu0 %v376
        %v1385 = vpop.f32.mrf.mxu0
        %v1386 = vadd.f32 0.0, %v1385
        %v1387 = vpop.f32.mrf.mxu0
        %1388 = vmatprep.mubr.f32.mxu0 0.0
        %1389 = vmatmul.mubr.f32.gmra.mxu0 %v377
        %v1390 = vpop.f32.mrf.mxu0
        %v1391 = vadd.f32 0.0, %v1390
        %v1392 = vpop.f32.mrf.mxu0
        %1393 = vmatprep.mubr.f32.mxu0 0.0
        %1394 = vmatmul.mubr.f32.gmra.mxu0 %v378
        %v1395 = vpop.f32.mrf.mxu0
        %v1396 = vadd.f32 0.0, %v1395
        %v1397 = vpop.f32.mrf.mxu0
        %1398 = vmatprep.mubr.f32.mxu0 0.0
        %1399 = vmatmul.mubr.f32.gmra.mxu0 %v379
        %v1400 = vpop.f32.mrf.mxu0
        %v1401 = vadd.f32 0.0, %v1400
        %v1402 = vpop.f32.mrf.mxu0
        %1403 = vmatprep.mubr.f32.mxu0 0.0
        %1404 = vmatmul.mubr.f32.gmra.mxu0 %v380
        %v1405 = vpop.f32.mrf.mxu0
        %v1406 = vadd.f32 0.0, %v1405
        %v1407 = vpop.f32.mrf.mxu0
        %1408 = vmatprep.mubr.f32.mxu0 0.0
        %1409 = vmatmul.mubr.f32.gmra.mxu0 %v381
        %v1410 = vpop.f32.mrf.mxu0
        %v1411 = vadd.f32 0.0, %v1410
        %v1412 = vpop.f32.mrf.mxu0
        %1413 = vmatprep.mubr.f32.mxu0 0.0
        %1414 = vmatmul.mubr.f32.gmra.mxu0 %v382
        %v1415 = vpop.f32.mrf.mxu0
        %v1416 = vadd.f32 0.0, %v1415
        %v1417 = vpop.f32.mrf.mxu0
        %1418 = vmatprep.mubr.f32.mxu0 0.0
        %1419 = vmatmul.mubr.f32.gmra.mxu0 %v383
        %v1420 = vpop.f32.mrf.mxu0
        %v1421 = vadd.f32 0.0, %v1420
        %v1422 = vpop.f32.mrf.mxu0
        %1423 = vmatprep.mubr.f32.mxu0 0.0
        %1424 = vmatmul.mubr.f32.gmra.mxu0 %v384
        %v1425 = vpop.f32.mrf.mxu0
        %v1426 = vadd.f32 0.0, %v1425
        %v1427 = vpop.f32.mrf.mxu0
        %1428 = vmatprep.mubr.f32.mxu0 0.0
        %1429 = vmatmul.mubr.f32.gmra.mxu0 %v385
        %v1430 = vpop.f32.mrf.mxu0
        %v1431 = vadd.f32 0.0, %v1430
        %v1432 = vpop.f32.mrf.mxu0
        %1433 = vdwg.mxu0
        %v1434 = vlaneseq
        %v1435 = vshrl.u32 %v1434, 7
        %v1436 = vsub.s32 0, %v1435
        %v1437 = vrot.slane %v483, %v1436
        %1438 = vmatprep.subr.mxu0 0.0
        %1439 = vmatpush1.msra.mxu0 %v434
        %1440 = vmatprep.subr.mxu0 0.0
        %1441 = vmatpush1.msra.mxu0 %v433
        %1442 = vmatprep.subr.mxu0 0.0
        %1443 = vmatpush1.msra.mxu0 %v432
        %1444 = vmatprep.subr.mxu0 0.0
        %1445 = vmatpush1.msra.mxu0 %v431
        %1446 = vmatprep.subr.mxu0 0.0
        %1447 = vmatpush1.msra.mxu0 %v430
        %1448 = vmatprep.subr.mxu0 0.0
        %1449 = vmatpush1.msra.mxu0 %v429
        %1450 = vmatprep.subr.mxu0 0.0
        %1451 = vmatpush1.msra.mxu0 %v428
        %1452 = vmatprep.subr.mxu0 0.0
        %1453 = vmatpush1.msra.mxu0 %v427
        %1454 = vmatprep.subr.mxu0 0.0
        %1455 = vmatpush1.msra.mxu0 %v426
        %1456 = vmatprep.subr.mxu0 0.0
        %1457 = vmatpush1.msra.mxu0 %v425
        %1458 = vmatprep.subr.mxu0 0.0
        %1459 = vmatpush1.msra.mxu0 %v424
        %1460 = vmatprep.subr.mxu0 0.0
        %1461 = vmatpush1.msra.mxu0 %v423
        %1462 = vmatprep.subr.mxu0 0.0
        %1463 = vmatpush1.msra.mxu0 %v422
        %1464 = vmatprep.subr.mxu0 0.0
        %1465 = vmatpush1.msra.mxu0 %v421
        %1466 = vmatprep.subr.mxu0 0.0
        %1467 = vmatpush1.msra.mxu0 %v420
        %1468 = vmatprep.subr.mxu0 0.0
        %1469 = vmatpush1.msra.mxu0 %v419
        %1470 = vmatprep.subr.mxu0 0.0
        %1471 = vmatpush2.msra.mxu0 %v450
        %1472 = vmatprep.subr.mxu0 0.0
        %1473 = vmatpush2.msra.mxu0 %v449
        %1474 = vmatprep.subr.mxu0 0.0
        %1475 = vmatpush2.msra.mxu0 %v448
        %1476 = vmatprep.subr.mxu0 0.0
        %1477 = vmatpush2.msra.mxu0 %v447
        %1478 = vmatprep.subr.mxu0 0.0
        %1479 = vmatpush2.msra.mxu0 %v446
        %1480 = vmatprep.subr.mxu0 0.0
        %1481 = vmatpush2.msra.mxu0 %v445
        %1482 = vmatprep.subr.mxu0 0.0
        %1483 = vmatpush2.msra.mxu0 %v444
        %1484 = vmatprep.subr.mxu0 0.0
        %1485 = vmatpush2.msra.mxu0 %v443
        %1486 = vmatprep.subr.mxu0 0.0
        %1487 = vmatpush2.msra.mxu0 %v442
        %1488 = vmatprep.subr.mxu0 0.0
        %1489 = vmatpush2.msra.mxu0 %v441
        %1490 = vmatprep.subr.mxu0 0.0
        %1491 = vmatpush2.msra.mxu0 %v440
        %1492 = vmatprep.subr.mxu0 0.0
        %1493 = vmatpush2.msra.mxu0 %v439
        %1494 = vmatprep.subr.mxu0 0.0
        %1495 = vmatpush2.msra.mxu0 %v438
        %1496 = vmatprep.subr.mxu0 0.0
        %1497 = vmatpush2.msra.mxu0 %v437
        %1498 = vmatprep.subr.mxu0 0.0
        %1499 = vmatpush2.msra.mxu0 %v436
        %1500 = vmatprep.subr.mxu0 0.0
        %1501 = vmatpush2.msra.mxu0 %v435
        %1502 = vmatprep.mubr.f32.mxu0 %v1356
        %1503 = vmatmul.mubr.f32.gmra.mxu0 %v354
        %v1504 = vpop.f32.mrf.mxu0
        %v1505 = vadd.f32 %v1437, %v1504
        %v1506 = vpop.f32.mrf.mxu0
        %1507 = vmatprep.mubr.f32.mxu0 %v1361
        %1508 = vmatmul.mubr.f32.gmra.mxu0 %v355
        %v1509 = vpop.f32.mrf.mxu0
        %v1510 = vadd.f32 %v1437, %v1509
        %v1511 = vpop.f32.mrf.mxu0
        %1512 = vmatprep.mubr.f32.mxu0 %v1366
        %1513 = vmatmul.mubr.f32.gmra.mxu0 %v356
        %v1514 = vpop.f32.mrf.mxu0
        %v1515 = vadd.f32 %v1437, %v1514
        %v1516 = vpop.f32.mrf.mxu0
        %1517 = vmatprep.mubr.f32.mxu0 %v1371
        %1518 = vmatmul.mubr.f32.gmra.mxu0 %v357
        %v1519 = vpop.f32.mrf.mxu0
        %v1520 = vadd.f32 %v1437, %v1519
        %v1521 = vpop.f32.mrf.mxu0
        %1522 = vmatprep.mubr.f32.mxu0 %v1376
        %1523 = vmatmul.mubr.f32.gmra.mxu0 %v358
        %v1524 = vpop.f32.mrf.mxu0
        %v1525 = vadd.f32 %v1437, %v1524
        %v1526 = vpop.f32.mrf.mxu0
        %1527 = vmatprep.mubr.f32.mxu0 %v1381
        %1528 = vmatmul.mubr.f32.gmra.mxu0 %v359
        %v1529 = vpop.f32.mrf.mxu0
        %v1530 = vadd.f32 %v1437, %v1529
        %v1531 = vpop.f32.mrf.mxu0
        %1532 = vmatprep.mubr.f32.mxu0 %v1386
        %1533 = vmatmul.mubr.f32.gmra.mxu0 %v360
        %v1534 = vpop.f32.mrf.mxu0
        %v1535 = vadd.f32 %v1437, %v1534
        %v1536 = vpop.f32.mrf.mxu0
        %1537 = vmatprep.mubr.f32.mxu0 %v1391
        %1538 = vmatmul.mubr.f32.gmra.mxu0 %v361
        %v1539 = vpop.f32.mrf.mxu0
        %v1540 = vadd.f32 %v1437, %v1539
        %v1541 = vpop.f32.mrf.mxu0
        %1542 = vmatprep.mubr.f32.mxu0 %v1396
        %1543 = vmatmul.mubr.f32.gmra.mxu0 %v362
        %v1544 = vpop.f32.mrf.mxu0
        %v1545 = vadd.f32 %v1437, %v1544
        %v1546 = vpop.f32.mrf.mxu0
        %1547 = vmatprep.mubr.f32.mxu0 %v1401
        %1548 = vmatmul.mubr.f32.gmra.mxu0 %v363
        %v1549 = vpop.f32.mrf.mxu0
        %v1550 = vadd.f32 %v1437, %v1549
        %v1551 = vpop.f32.mrf.mxu0
        %1552 = vmatprep.mubr.f32.mxu0 %v1406
        %1553 = vmatmul.mubr.f32.gmra.mxu0 %v364
        %v1554 = vpop.f32.mrf.mxu0
        %v1555 = vadd.f32 %v1437, %v1554
        %v1556 = vpop.f32.mrf.mxu0
        %1557 = vmatprep.mubr.f32.mxu0 %v1411
        %1558 = vmatmul.mubr.f32.gmra.mxu0 %v365
        %v1559 = vpop.f32.mrf.mxu0
        %v1560 = vadd.f32 %v1437, %v1559
        %v1561 = vpop.f32.mrf.mxu0
        %1562 = vmatprep.mubr.f32.mxu0 %v1416
        %1563 = vmatmul.mubr.f32.gmra.mxu0 %v366
        %v1564 = vpop.f32.mrf.mxu0
        %v1565 = vadd.f32 %v1437, %v1564
        %v1566 = vpop.f32.mrf.mxu0
        %1567 = vmatprep.mubr.f32.mxu0 %v1421
        %1568 = vmatmul.mubr.f32.gmra.mxu0 %v367
        %v1569 = vpop.f32.mrf.mxu0
        %v1570 = vadd.f32 %v1437, %v1569
        %v1571 = vpop.f32.mrf.mxu0
        %1572 = vmatprep.mubr.f32.mxu0 %v1426
        %1573 = vmatmul.mubr.f32.gmra.mxu0 %v368
        %v1574 = vpop.f32.mrf.mxu0
        %v1575 = vadd.f32 %v1437, %v1574
        %v1576 = vpop.f32.mrf.mxu0
        %1577 = vmatprep.mubr.f32.mxu0 %v1431
        %1578 = vmatmul.mubr.f32.gmra.mxu0 %v369
        %v1579 = vpop.f32.mrf.mxu0
        %v1580 = vadd.f32 %v1437, %v1579
        %v1581 = vpop.f32.mrf.mxu0
        %1582 = vdwg.mxu0
        %v1583 = vmax.f32 %v1505, 0.0
        %v1584 = vmax.f32 %v1510, 0.0
        %v1585 = vmax.f32 %v1515, 0.0
        %v1586 = vmax.f32 %v1520, 0.0
        %v1587 = vmax.f32 %v1525, 0.0
        %v1588 = vmax.f32 %v1530, 0.0
        %v1589 = vmax.f32 %v1535, 0.0
        %v1590 = vmax.f32 %v1540, 0.0
        %v1591 = vmax.f32 %v1545, 0.0
        %v1592 = vmax.f32 %v1550, 0.0
        %v1593 = vmax.f32 %v1555, 0.0
        %v1594 = vmax.f32 %v1560, 0.0
        %v1595 = vmax.f32 %v1565, 0.0
        %v1596 = vmax.f32 %v1570, 0.0
        %v1597 = vmax.f32 %v1575, 0.0
        %v1598 = vmax.f32 %v1580, 0.0
        %1599 = vmatprep.subr.mxu0 0.0
        %1600 = vmatpush1.msra.mxu0 %v1598
        %1601 = vmatprep.subr.mxu0 0.0
        %1602 = vmatpush1.msra.mxu0 %v1597
        %1603 = vmatprep.subr.mxu0 0.0
        %1604 = vmatpush1.msra.mxu0 %v1596
        %1605 = vmatprep.subr.mxu0 0.0
        %1606 = vmatpush1.msra.mxu0 %v1595
        %1607 = vmatprep.subr.mxu0 0.0
        %1608 = vmatpush1.msra.mxu0 %v1594
        %1609 = vmatprep.subr.mxu0 0.0
        %1610 = vmatpush1.msra.mxu0 %v1593
        %1611 = vmatprep.subr.mxu0 0.0
        %1612 = vmatpush1.msra.mxu0 %v1592
        %1613 = vmatprep.subr.mxu0 0.0
        %1614 = vmatpush1.msra.mxu0 %v1591
        %1615 = vmatprep.subr.mxu0 0.0
        %1616 = vmatpush1.msra.mxu0 %v1590
        %1617 = vmatprep.subr.mxu0 0.0
        %1618 = vmatpush1.msra.mxu0 %v1589
        %1619 = vmatprep.subr.mxu0 0.0
        %1620 = vmatpush1.msra.mxu0 %v1588
        %1621 = vmatprep.subr.mxu0 0.0
        %1622 = vmatpush1.msra.mxu0 %v1587
        %1623 = vmatprep.subr.mxu0 0.0
        %1624 = vmatpush1.msra.mxu0 %v1586
        %1625 = vmatprep.subr.mxu0 0.0
        %1626 = vmatpush1.msra.mxu0 %v1585
        %1627 = vmatprep.subr.mxu0 0.0
        %1628 = vmatpush1.msra.mxu0 %v1584
        %1629 = vmatprep.subr.mxu0 0.0
        %1630 = vmatpush1.msra.mxu0 %v1583
        %1631 = vmatprep.subr.mxu0 0.0
        %1632 = vmatpush2.msra.mxu0 0.0
        %1633 = vmatprep.subr.mxu0 0.0
        %1634 = vmatpush2.msra.mxu0 0.0
        %1635 = vmatprep.subr.mxu0 0.0
        %1636 = vmatpush2.msra.mxu0 0.0
        %1637 = vmatprep.subr.mxu0 0.0
        %1638 = vmatpush2.msra.mxu0 0.0
        %1639 = vmatprep.subr.mxu0 0.0
        %1640 = vmatpush2.msra.mxu0 0.0
        %1641 = vmatprep.subr.mxu0 0.0
        %1642 = vmatpush2.msra.mxu0 0.0
        %1643 = vmatprep.subr.mxu0 0.0
        %1644 = vmatpush2.msra.mxu0 0.0
        %1645 = vmatprep.subr.mxu0 0.0
        %1646 = vmatpush2.msra.mxu0 0.0
        %1647 = vmatprep.subr.mxu0 0.0
        %1648 = vmatpush2.msra.mxu0 0.0
        %1649 = vmatprep.subr.mxu0 0.0
        %1650 = vmatpush2.msra.mxu0 0.0
        %1651 = vmatprep.subr.mxu0 0.0
        %1652 = vmatpush2.msra.mxu0 0.0
        %1653 = vmatprep.subr.mxu0 0.0
        %1654 = vmatpush2.msra.mxu0 0.0
        %1655 = vmatprep.subr.mxu0 0.0
        %1656 = vmatpush2.msra.mxu0 0.0
        %1657 = vmatprep.subr.mxu0 0.0
        %1658 = vmatpush2.msra.mxu0 0.0
        %1659 = vmatprep.subr.mxu0 0.0
        %1660 = vmatpush2.msra.mxu0 0.0
        %1661 = vmatprep.subr.mxu0 0.0
        %1662 = vmatpush2.msra.mxu0 0.0
        %1663 = vmatprep.mubr.f32.mxu0 0.0
        %1664 = vmatmul.mubr.f32.gmra.mxu0 %v386
        %v1665 = vpop.f32.mrf.mxu0
        %v1666 = vadd.f32 0.0, %v1665
        %v1667 = vpop.f32.mrf.mxu0
        %1668 = vdwg.mxu0
        %v1669 = vlaneseq
        %v1670 = vshrl.u32 %v1669, 7
        %v1671 = vsub.s32 1, %v1670
        %v1672 = vrot.slane %v483, %v1671
        %1673 = vmatprep.subr.mxu0 0.0
        %1674 = vmatpush1.msra.mxu0 %v466
        %1675 = vmatprep.subr.mxu0 0.0
        %1676 = vmatpush1.msra.mxu0 %v465
        %1677 = vmatprep.subr.mxu0 0.0
        %1678 = vmatpush1.msra.mxu0 %v464
        %1679 = vmatprep.subr.mxu0 0.0
        %1680 = vmatpush1.msra.mxu0 %v463
        %1681 = vmatprep.subr.mxu0 0.0
        %1682 = vmatpush1.msra.mxu0 %v462
        %1683 = vmatprep.subr.mxu0 0.0
        %1684 = vmatpush1.msra.mxu0 %v461
        %1685 = vmatprep.subr.mxu0 0.0
        %1686 = vmatpush1.msra.mxu0 %v460
        %1687 = vmatprep.subr.mxu0 0.0
        %1688 = vmatpush1.msra.mxu0 %v459
        %1689 = vmatprep.subr.mxu0 0.0
        %1690 = vmatpush1.msra.mxu0 %v458
        %1691 = vmatprep.subr.mxu0 0.0
        %1692 = vmatpush1.msra.mxu0 %v457
        %1693 = vmatprep.subr.mxu0 0.0
        %1694 = vmatpush1.msra.mxu0 %v456
        %1695 = vmatprep.subr.mxu0 0.0
        %1696 = vmatpush1.msra.mxu0 %v455
        %1697 = vmatprep.subr.mxu0 0.0
        %1698 = vmatpush1.msra.mxu0 %v454
        %1699 = vmatprep.subr.mxu0 0.0
        %1700 = vmatpush1.msra.mxu0 %v453
        %1701 = vmatprep.subr.mxu0 0.0
        %1702 = vmatpush1.msra.mxu0 %v452
        %1703 = vmatprep.subr.mxu0 0.0
        %1704 = vmatpush1.msra.mxu0 %v451
        %1705 = vmatprep.subr.mxu0 0.0
        %1706 = vmatpush2.msra.mxu0 0.0
        %1707 = vmatprep.subr.mxu0 0.0
        %1708 = vmatpush2.msra.mxu0 0.0
        %1709 = vmatprep.subr.mxu0 0.0
        %1710 = vmatpush2.msra.mxu0 0.0
        %1711 = vmatprep.subr.mxu0 0.0
        %1712 = vmatpush2.msra.mxu0 0.0
        %1713 = vmatprep.subr.mxu0 0.0
        %1714 = vmatpush2.msra.mxu0 0.0
        %1715 = vmatprep.subr.mxu0 0.0
        %1716 = vmatpush2.msra.mxu0 0.0
        %1717 = vmatprep.subr.mxu0 0.0
        %1718 = vmatpush2.msra.mxu0 0.0
        %1719 = vmatprep.subr.mxu0 0.0
        %1720 = vmatpush2.msra.mxu0 0.0
        %1721 = vmatprep.subr.mxu0 0.0
        %1722 = vmatpush2.msra.mxu0 0.0
        %1723 = vmatprep.subr.mxu0 0.0
        %1724 = vmatpush2.msra.mxu0 0.0
        %1725 = vmatprep.subr.mxu0 0.0
        %1726 = vmatpush2.msra.mxu0 0.0
        %1727 = vmatprep.subr.mxu0 0.0
        %1728 = vmatpush2.msra.mxu0 0.0
        %1729 = vmatprep.subr.mxu0 0.0
        %1730 = vmatpush2.msra.mxu0 0.0
        %1731 = vmatprep.subr.mxu0 0.0
        %1732 = vmatpush2.msra.mxu0 0.0
        %1733 = vmatprep.subr.mxu0 0.0
        %1734 = vmatpush2.msra.mxu0 0.0
        %1735 = vmatprep.subr.mxu0 0.0
        %1736 = vmatpush2.msra.mxu0 0.0
        %1737 = vmatprep.mubr.f32.mxu0 0.0
        %1738 = vmatmul.mubr.f32.gmra.mxu0 %v1666
        %v1739 = vpop.f32.mrf.mxu0
        %v1740 = vadd.f32 %v1672, %v1739
        %v1741 = vpop.f32.mrf.mxu0
        %1742 = vdwg.mxu0
        %v1743 = vmax.f32 %v1740, 0.0
        %v1744 = vlaneseq
        %v1745 = vshrl.u32 %v1744, 7
        %v1746 = vsub.s32 2, %v1745
        %v1747 = vrot.slane %v483, %v1746
        %1748 = vmatprep.subr.mxu0 0.0
        %1749 = vmatpush1.msra.mxu0 %v482
        %1750 = vmatprep.subr.mxu0 0.0
        %1751 = vmatpush1.msra.mxu0 %v481
        %1752 = vmatprep.subr.mxu0 0.0
        %1753 = vmatpush1.msra.mxu0 %v480
        %1754 = vmatprep.subr.mxu0 0.0
        %1755 = vmatpush1.msra.mxu0 %v479
        %1756 = vmatprep.subr.mxu0 0.0
        %1757 = vmatpush1.msra.mxu0 %v478
        %1758 = vmatprep.subr.mxu0 0.0
        %1759 = vmatpush1.msra.mxu0 %v477
        %1760 = vmatprep.subr.mxu0 0.0
        %1761 = vmatpush1.msra.mxu0 %v476
        %1762 = vmatprep.subr.mxu0 0.0
        %1763 = vmatpush1.msra.mxu0 %v475
        %1764 = vmatprep.subr.mxu0 0.0
        %1765 = vmatpush1.msra.mxu0 %v474
        %1766 = vmatprep.subr.mxu0 0.0
        %1767 = vmatpush1.msra.mxu0 %v473
        %1768 = vmatprep.subr.mxu0 0.0
        %1769 = vmatpush1.msra.mxu0 %v472
        %1770 = vmatprep.subr.mxu0 0.0
        %1771 = vmatpush1.msra.mxu0 %v471
        %1772 = vmatprep.subr.mxu0 0.0
        %1773 = vmatpush1.msra.mxu0 %v470
        %1774 = vmatprep.subr.mxu0 0.0
        %1775 = vmatpush1.msra.mxu0 %v469
        %1776 = vmatprep.subr.mxu0 0.0
        %1777 = vmatpush1.msra.mxu0 %v468
        %1778 = vmatprep.subr.mxu0 0.0
        %1779 = vmatpush1.msra.mxu0 %v467
        %1780 = vmatprep.subr.mxu0 0.0
        %1781 = vmatpush2.msra.mxu0 0.0
        %1782 = vmatprep.subr.mxu0 0.0
        %1783 = vmatpush2.msra.mxu0 0.0
        %1784 = vmatprep.subr.mxu0 0.0
        %1785 = vmatpush2.msra.mxu0 0.0
        %1786 = vmatprep.subr.mxu0 0.0
        %1787 = vmatpush2.msra.mxu0 0.0
        %1788 = vmatprep.subr.mxu0 0.0
        %1789 = vmatpush2.msra.mxu0 0.0
        %1790 = vmatprep.subr.mxu0 0.0
        %1791 = vmatpush2.msra.mxu0 0.0
        %1792 = vmatprep.subr.mxu0 0.0
        %1793 = vmatpush2.msra.mxu0 0.0
        %1794 = vmatprep.subr.mxu0 0.0
        %1795 = vmatpush2.msra.mxu0 0.0
        %1796 = vmatprep.subr.mxu0 0.0
        %1797 = vmatpush2.msra.mxu0 0.0
        %1798 = vmatprep.subr.mxu0 0.0
        %1799 = vmatpush2.msra.mxu0 0.0
        %1800 = vmatprep.subr.mxu0 0.0
        %1801 = vmatpush2.msra.mxu0 0.0
        %1802 = vmatprep.subr.mxu0 0.0
        %1803 = vmatpush2.msra.mxu0 0.0
        %1804 = vmatprep.subr.mxu0 0.0
        %1805 = vmatpush2.msra.mxu0 0.0
        %1806 = vmatprep.subr.mxu0 0.0
        %1807 = vmatpush2.msra.mxu0 0.0
        %1808 = vmatprep.subr.mxu0 0.0
        %1809 = vmatpush2.msra.mxu0 0.0
        %1810 = vmatprep.subr.mxu0 0.0
        %1811 = vmatpush2.msra.mxu0 0.0
        %1812 = vmatprep.mubr.f32.mxu0 0.0
        %1813 = vmatmul.mubr.f32.gmra.mxu0 %v1743
        %v1814 = vpop.f32.mrf.mxu0
        %v1815 = vadd.f32 %v1747, %v1814
        %v1816 = vpop.f32.mrf.mxu0
        %1817 = vdwg.mxu0
        %v1818 = vxor.u32 %v1815, 2147483648
        %v1819 = vmul.f32 %v1818, 1.442695
        %v1820 = vpow.pop %v1819
        %v1821 = vadd.f32 %v1820, 1.0
        %v1822 = vrcp.pop %v1821
        %v1823 = vmul.f32 1.0, %v1822
        %1824 = vst [vmem:[%s351] sm:$0xff] %v1823
        %s1825 = sand.u32 %s158, 1
        %s1826 = scalar_lea.sflag [#allocation4], %s1825
        %s1827 = sand.u32 %s158, 1
        %s1828 = smul.addr %s1827, 8
        %s1829 = scalar_lea.vmem [#allocation11], %s1828
        // Predicated region
        $region61: #{tpu_custom_call.1} parent=39 // pred_check
          %p1830 = pneg %p168
        $region62: #{tpu_custom_call.1} parent=39 // pred_check_branch
          %1832 = sbr.rel (%p1830) target = $region64
        $region63: #{tpu_custom_call.1} parent=39 // pred_region
          %s1834 = ssub.s32 128, 128
          %1835 = vsyncadd %s1826, %s1834
          %s1836 = smul.addr %s26, 128
          %s1837 = scalar_lea.hbm %s5, %s1836
          %s1839 = sshll.u32 %s1829, 4
          %s1840 = int_to_ptr.vmem [resolvable:$true] %s1839
          %1842 = dma.vmem_to_hbm [thread:$0]  %s1840, 128, %s1837, %s1826
        $region64: #{tpu_custom_call.1} parent=39 // pred_fallthru
          _
      $region40: #{tpu_custom_call.1} parent=5 // pred_fallthru
        _
      %p1843 = scmp.le.s32.totalorder 2, %s21
      // Predicated region
      $region65: #{tpu_custom_call.1} parent=5 // pred_check
        %p1844 = pneg %p1843
      $region66: #{tpu_custom_call.1} parent=5 // pred_check_branch
        %1846 = sbr.rel (%p1844) target = $region68
      $region67: #{tpu_custom_call.1} parent=5 // pred_region
        %s1847 = ssub.s32 %s21, 2
        // Predicated region
        $region69: #{tpu_custom_call.1} parent=67 // pred_check
          %p1848 = pneg %p174
        $region70: #{tpu_custom_call.1} parent=67 // pred_check_branch
          %1850 = sbr.rel (%p1848) target = $region72
        $region71: #{tpu_custom_call.1} parent=67 // pred_region
          %s1851 = sand.u32 %s159, 1
          %s1852 = scalar_lea.sflag [#allocation4], %s1851
          %s1853 = sand.u32 %s159, 1
          %s1854 = smul.addr %s1853, 8
          %s1855 = scalar_lea.vmem [#allocation11], %s1854
          %1856 = dma.done %s1852, 128
        $region72: #{tpu_custom_call.1} parent=67 // pred_fallthru
          _
      $region68: #{tpu_custom_call.1} parent=5 // pred_fallthru
        _
    $region6: #{tpu_custom_call.1} parent=1 // loop_footer
      %s25 = sadd.s32 1, %s21
    $region7: #{tpu_custom_call.1} parent=1 // loop_footer_branch
      %20 = sbr.rel target = $region3
    $region8: #{tpu_custom_call.1} parent=1 // loop_exit
      _
    %1857 = vsyncpa [#allocation3], 1
    %s1858 = scalar_lea.sflag [#allocation3], 1
    %1859 = vsyncpa %s1858, 1
    %1860 = vsyncpa [#allocation6], 1
    %s1861 = scalar_lea.sflag [#allocation6], 1
    %1862 = vsyncpa %s1861, 1
    %1863 = vsyncpa [#allocation9], 1
    %1864 = vsyncpa [#allocation4], 1
    %s1865 = scalar_lea.sflag [#allocation4], 1
    %1866 = vsyncpa %s1865, 1

</llo_original>
